<compile_context>
chip_gen: v6e
topology: v6e:2x2x1
jax: 0.10.0
libtpu: 0.0.40
codegen_flags: <defaults>
</compile_context>

<pallas_src>
import math

import jax
import jax.numpy as jnp
from jax.experimental import pallas as pl
from jax.experimental.pallas import tpu as pltpu  # noqa: F401  (TPU backend assumed)

# ---- model constants (the reference code's module-level globals) ----
DESIRED_VOCAB_LEN = 128
MODEL_SIZE = 32
MODEL_MLP_HIDDEN_LAYERS = 2      # kernel hard-codes this 2-hidden-layer MLP
MODEL_MLP_HIDDEN_LAYER_SIZE = 64
N_BLOCKS = 2
N_HEADS = 2
HEAD_DIM = 16
SEQ_LEN = 8
BATCH = 2
LN_EPS = 1e-5                    # torch.nn.LayerNorm default
NEG_BIG = -1e30                  # additive mask value (avoids inf-inf NaNs)

# row offsets inside the packed MLP slab (all 8-aligned sublane offsets)
_ROW_W1 = 0
_ROW_W2 = MODEL_SIZE                                      # 32
_ROW_W3 = MODEL_SIZE + MODEL_MLP_HIDDEN_LAYER_SIZE        # 96
_ROW_B1 = MODEL_SIZE + 2 * MODEL_MLP_HIDDEN_LAYER_SIZE    # 160
_ROW_B2 = _ROW_B1 + 8                                     # 168
_ROW_B3 = _ROW_B2 + 8                                     # 176
_WB_ROWS = _ROW_B3 + 8                                    # 184


# ---------------- in-kernel helpers (traced inside Pallas) ----------------
def _normalize(x):
    # LayerNorm with gamma/beta folded into the downstream weights host-side.
    mu = jnp.mean(x, axis=-1, keepdims=True)
    var = jnp.mean((x - mu) ** 2, axis=-1, keepdims=True)
    return (x - mu) * jax.lax.rsqrt(var + LN_EPS)


def _erf(x):
    # Abramowitz & Stegun 7.1.26 rational approximation, |err| < 1.5e-7.
    a1, a2, a3, a4, a5 = (0.254829592, -0.284496736, 1.421413741,
                          -1.453152027, 1.061405429)
    p = 0.3275911
    z = jnp.abs(x)
    t = 1.0 / (1.0 + p * z)
    poly = ((((a5 * t + a4) * t + a3) * t + a2) * t + a1) * t
    y = 1.0 - poly * jnp.exp(-z * z)
    return jnp.where(x >= 0, y, -y)


def _gelu(x):
    # matches torch.nn.GELU() default (erf form) to ~1e-7
    return 0.5 * x * (1.0 + _erf(x * (1.0 / math.sqrt(2.0))))


# ---------------- single fused forward kernel ----------------
def fused_transformer_kernel(tok_ref, ec_ref, wa_ref, wb_ref, wout_ref, o_ref):
    f32 = jnp.float32
    D, Hm, V = MODEL_SIZE, MODEL_MLP_HIDDEN_LAYER_SIZE, DESIRED_VOCAB_LEN
    HHD = N_HEADS * HEAD_DIM
    R = tok_ref.shape[0]                                     # = BATCH * SEQ_LEN

    # --- embedding lookup: one-hot gather on the MXU (no HBM round trip) ---
    tok = tok_ref[...]                                       # (R, 1) int32
    col = jax.lax.broadcasted_iota(jnp.int32, (R, V), 1)
    onehot = (col == tok).astype(f32)                        # (R, V)
    x = jnp.dot(onehot, ec_ref[0:V, :], preferred_element_type=f32)   # (R, D)

    bias = ec_ref[V:V + R, 0:R]                              # (R, R) additive mask
    cos = ec_ref[V + R:V + 2 * R, 0:HHD]                     # (R, HHD)
    sin = ec_ref[V + 2 * R:V + 3 * R, 0:HHD]

    for blk in range(N_BLOCKS):                              # unrolled at trace time
        # ---- attention: x += sum_h softmax(qh kh^T + bias) @ (v @ Wo)_h ----
        h = _normalize(x)
        Wf = wa_ref[blk, 0:D, :]                             # (D, 4*HHD + H*D) = (32,192)
        bf = wa_ref[blk, D:D + 1, :]                         # folded LN1-beta bias row
        qkv = jnp.dot(h, Wf, preferred_element_type=f32) + bf        # (R, 192)
        # RoPE is pure elementwise: q_rot/k_rot columns were produced by the MXU
        q = qkv[:, 0:HHD] * cos + qkv[:, HHD:2 * HHD] * sin          # pre-scaled q
        k = qkv[:, 2 * HHD:3 * HHD] * cos + qkv[:, 3 * HHD:4 * HHD] * sin
        attn = jnp.zeros_like(x)
        for hh in range(N_HEADS):                            # unrolled (N_HEADS = 2)
            qh = q[:, hh * HEAD_DIM:(hh + 1) * HEAD_DIM]
            kh = k[:, hh * HEAD_DIM:(hh + 1) * HEAD_DIM]
            vh = qkv[:, 4 * HHD + hh * D:4 * HHD + (hh + 1) * D]     # (R, D), Wo folded
            s = jax.lax.dot_general(qh, kh, (((1,), (1,)), ((), ())),
                                    preferred_element_type=f32) + bias
            m = jnp.max(s, axis=-1, keepdims=True)
            p = jnp.exp(s - m)
            p = p * pl.reciprocal(jnp.sum(p, axis=-1, keepdims=True), approx=True)
            attn = attn + jnp.dot(p, vh, preferred_element_type=f32)
        x = x + attn                                                  # residual 1

        # ---- MLP: x += W3(GELU(W2(GELU(W1 LN2(x) + b1)) + b2)) + b3 ----
        h2 = _normalize(x)
        W1 = wb_ref[blk, _ROW_W1:_ROW_W1 + D, :]             # (32, 64), gamma2 folded
        W2 = wb_ref[blk, _ROW_W2:_ROW_W2 + Hm, :]            # (64, 64)
        W3 = wb_ref[blk, _ROW_W3:_ROW_W3 + Hm, 0:D]          # (64, 32)
        b1 = wb_ref[blk, _ROW_B1:_ROW_B1 + 1, :]
        b2 = wb_ref[blk, _ROW_B2:_ROW_B2 + 1, :]
        b3 = wb_ref[blk, _ROW_B3:_ROW_B3 + 1, 0:D]
        m1 = _gelu(jnp.dot(h2, W1, preferred_element_type=f32) + b1)
        m2 = _gelu(jnp.dot(m1, W2, preferred_element_type=f32) + b2)
        x = x + jnp.dot(m2, W3, preferred_element_type=f32) + b3     # residual 2

    # ---- vocab projection: the only HBM store, lane-dense (R, 128) ----
    logits = (jnp.dot(x, wout_ref[0:D, :], preferred_element_type=f32)
              + wout_ref[D:D + 1, :])
    o_ref[...] = logits.astype(o_ref.dtype)


# ---------------- host-side: raw params, folding/packing, wrapper ----------------
def rope_tables(seq_len, head_dim, base=10000.0):
    half = head_dim // 2
    inv_freq = 1.0 / (base ** (jnp.arange(half, dtype=jnp.float32) * 2.0 / head_dim))
    ang = jnp.arange(seq_len, dtype=jnp.float32)[:, None] * inv_freq[None, :]
    cos = jnp.concatenate([jnp.cos(ang), jnp.cos(ang)], axis=-1)       # (S, hd)
    sin = jnp.concatenate([jnp.sin(ang), jnp.sin(ang)], axis=-1)
    return cos, sin


def init_raw_params(key):
    """Raw (unfused) parameters, semantically matching the PyTorch module."""
    D, Hm, V = MODEL_SIZE, MODEL_MLP_HIDDEN_LAYER_SIZE, DESIRED_VOCAB_LEN
    HHD = N_HEADS * HEAD_DIM
    keys = iter(jax.random.split(key, 8 * N_BLOCKS + 8))

    def nrm(shape, scale=0.02):
        return scale * jax.random.normal(next(keys), shape, dtype=jnp.float32)

    blocks = []
    for _ in range(N_BLOCKS):
        blocks.append(dict(
            Wqkv=nrm((D, 3 * HHD)), Wo=nrm((HHD, D)),
            W1=nrm((D, Hm)), b1=nrm((Hm,)),
            W2=nrm((Hm, Hm)), b2=nrm((Hm,)),
            W3=nrm((Hm, D)), b3=nrm((D,)),
            ln1_g=jnp.ones((D,), jnp.float32), ln1_b=jnp.zeros((D,), jnp.float32),
            ln2_g=jnp.ones((D,), jnp.float32), ln2_b=jnp.zeros((D,), jnp.float32)))
    return dict(emb=nrm((V, D), 1.0), blocks=blocks,
                Wout=nrm((D, V)), bout=nrm((V,)))


def pack_params(raw, batch, seq_len):
    """Fold rot / W_o / score-scale / LN-gamma-beta into the weights and pack
    everything into 4 lane-dense slabs."""
    D, Hm, V = MODEL_SIZE, MODEL_MLP_HIDDEN_LAYER_SIZE, DESIRED_VOCAB_LEN
    HHD, hd = N_HEADS * HEAD_DIM, HEAD_DIM
    R = batch * seq_len
    assert HHD == D and R <= D, "packed slab layout assumes HHD == D and B*S <= D"

    # additive attention bias: causal within a sequence, NEG_BIG across sequences
    idx = jnp.arange(R)
    same_seq = (idx[:, None] // seq_len) == (idx[None, :] // seq_len)
    causal = (idx[None, :] % seq_len) <= (idx[:, None] % seq_len)
    bias = jnp.where(same_seq & causal, 0.0, NEG_BIG).astype(jnp.float32)   # (R, R)

    # rotate-half as a block-diagonal +/-1 matrix: rotate_half(x) == x @ rot
    half = hd // 2
    r = jnp.zeros((hd, hd), jnp.float32)
    r = r.at[half:, :half].set(-jnp.eye(half, dtype=jnp.float32))
    r = r.at[:half, half:].set(jnp.eye(half, dtype=jnp.float32))
    rot = jnp.kron(jnp.eye(N_HEADS, dtype=jnp.float32), r)                  # (HHD, HHD)

    cos, sin = rope_tables(seq_len, hd)
    cos_full = jnp.tile(jnp.tile(cos, (1, N_HEADS)), (batch, 1))            # (R, HHD)
    sin_full = jnp.tile(jnp.tile(sin, (1, N_HEADS)), (batch, 1))

    # slab 0: embedding table + mask + RoPE tables, all D lanes wide
    bias_pad = jnp.pad(bias, ((0, 0), (0, D - R)))
    emb_const = jnp.concatenate([raw["emb"], bias_pad, cos_full, sin_full], axis=0)

    scale = 1.0 / math.sqrt(hd)
    wa, wb = [], []
    for p in raw["blocks"]:
        Wq = p["Wqkv"][:, 0:HHD] * scale                    # score scale folded into Wq
        Wk = p["Wqkv"][:, HHD:2 * HHD]
        Wv = p["Wqkv"][:, 2 * HHD:3 * HHD]
        Wvo = jnp.concatenate(                              # W_o folded into V per head
            [Wv[:, h * hd:(h + 1) * hd] @ p["Wo"][h * hd:(h + 1) * hd, :]
             for h in range(N_HEADS)], axis=-1)             # (D, N_HEADS*D)
        Wf_base = jnp.concatenate([Wq, Wq @ rot, Wk, Wk @ rot, Wvo], axis=-1)  # (D,192)
        bf = p["ln1_b"] @ Wf_base                           # LN1 beta -> bias row
        Wf = p["ln1_g"][:, None] * Wf_base                  # LN1 gamma -> weight rows
        wa.append(jnp.concatenate([Wf, bf[None, :]], axis=0))        # (D+1, 192)

        W1f = p["ln2_g"][:, None] * p["W1"]                 # LN2 gamma/beta -> W1/b1
        b1f = p["b1"] + p["ln2_b"] @ p["W1"]
        slab = jnp.zeros((_WB_ROWS, Hm), jnp.float32)
        slab = slab.at[_ROW_W1:_ROW_W1 + D, :].set(W1f)
        slab = slab.at[_ROW_W2:_ROW_W2 + Hm, :].set(p["W2"])
        slab = slab.at[_ROW_W3:_ROW_W3 + Hm, 0:D].set(p["W3"])
        slab = slab.at[_ROW_B1, :].set(b1f)
        slab = slab.at[_ROW_B2, :].set(p["b2"])
        slab = slab.at[_ROW_B3, 0:D].set(p["b3"])
        wb.append(slab)

    wout = jnp.concatenate([raw["Wout"], raw["bout"][None, :]], axis=0)      # (D+1, V)
    return dict(emb_const=emb_const, wa=jnp.stack(wa), wb=jnp.stack(wb), wout=wout)


@jax.jit
def transformer_forward(tokens, packed):
    B, S = tokens.shape
    R = B * S
    tok = tokens.reshape(R, 1).astype(jnp.int32)
    logits = pl.pallas_call(
        fused_transformer_kernel,
        out_shape=jax.ShapeDtypeStruct((R, DESIRED_VOCAB_LEN), jnp.float32),
        # grid-less: every (tiny) operand is a whole-array VMEM block; 4 weight/const
        # DMAs + 1 token vector in, one lane-dense (R,128) logits store out.
    )(tok, packed["emb_const"], packed["wa"], packed["wb"], packed["wout"])
    return logits.reshape(B, S, DESIRED_VOCAB_LEN)


# ---------------- pure-JAX reference (PyTorch semantics) ----------------
def _layernorm_ref(x, g, b):
    mu = jnp.mean(x, axis=-1, keepdims=True)
    var = jnp.mean((x - mu) ** 2, axis=-1, keepdims=True)
    return (x - mu) * jax.lax.rsqrt(var + LN_EPS) * g + b


def reference_forward(tokens, raw):
    B, S = tokens.shape
    hd = HEAD_DIM
    x = raw["emb"][tokens]                                   # (B, S, D)
    cos, sin = rope_tables(S, hd)                            # (S, hd)
    causal = jnp.tril(jnp.ones((S, S), dtype=bool))

    def rope(t):                                             # t: (B, H, S, hd)
        t1, t2 = t[..., :hd // 2], t[..., hd // 2:]
        return t * cos + jnp.concatenate([-t2, t1], axis=-1) * sin

    for p in raw["blocks"]:
        h = _layernorm_ref(x, p["ln1_g"], p["ln1_b"])
        qkv = h @ p["Wqkv"]
        q, k, v = jnp.split(qkv, 3, axis=-1)
        q = rope(q.reshape(B, S, N_HEADS, hd).transpose(0, 2, 1, 3))
        k = rope(k.reshape(B, S, N_HEADS, hd).transpose(0, 2, 1, 3))
        v = v.reshape(B, S, N_HEADS, hd).transpose(0, 2, 1, 3)
        s = jnp.einsum("bhqd,bhkd->bhqk", q, k) / math.sqrt(hd)
        s = jnp.where(causal, s, -jnp.inf)
        o = jnp.einsum("bhqk,bhkd->bhqd", jax.nn.softmax(s, axis=-1), v)
        o = o.transpose(0, 2, 1, 3).reshape(B, S, N_HEADS * hd)
        x = x + o @ p["Wo"]
        h2 = _layernorm_ref(x, p["ln2_g"], p["ln2_b"])
        m1 = jax.nn.gelu(h2 @ p["W1"] + p["b1"], approximate=False)
        m2 = jax.nn.gelu(m1 @ p["W2"] + p["b2"], approximate=False)
        x = x + m2 @ p["W3"] + p["b3"]
    return x @ raw["Wout"] + raw["bout"]


if __name__ == "__main__":
    key = jax.random.PRNGKey(0)
    k_params, k_tok = jax.random.split(key)
    raw = init_raw_params(k_params)
    packed = pack_params(raw, BATCH, SEQ_LEN)
    tokens = jax.random.randint(k_tok, (BATCH, SEQ_LEN), 0, DESIRED_VOCAB_LEN,
                                dtype=jnp.int32)

    logits = transformer_forward(tokens, packed)
    jax.block_until_ready(logits)

    assert logits.shape == (BATCH, SEQ_LEN, DESIRED_VOCAB_LEN)
    assert bool(jnp.all(jnp.isfinite(logits)))
    ref = reference_forward(tokens, raw)
    err = float(jnp.max(jnp.abs(logits - ref)))
    assert err < 2e-3, f"kernel/reference mismatch, max abs err = {err}"
    print("KERNEL_OK")
</pallas_src>

<mosaic_0001>
module attributes {stable_mosaic.version = 11 : i64} {
  func.func @fused_transformer_kernel(%arg0: memref<16x1xi32, #tpu.memory_space<vmem>>, %arg1: memref<176x32xf32, #tpu.memory_space<vmem>>, %arg2: memref<2x33x192xf32, #tpu.memory_space<vmem>>, %arg3: memref<2x184x64xf32, #tpu.memory_space<vmem>>, %arg4: memref<33x128xf32, #tpu.memory_space<vmem>>, %arg5: memref<16x128xf32, #tpu.memory_space<vmem>>) attributes {dimension_semantics = [], scalar_prefetch = 0 : i64, scratch_operands = 0 : i64, tpu.core_type = #tpu.core_type<tc>} {
    %c0 = arith.constant 0 : index
    %c0_0 = arith.constant 0 : index
    %0 = vector.load %arg0[%c0, %c0_0] : memref<16x1xi32, #tpu.memory_space<vmem>>, vector<16x1xi32>
    %1 = tpu.iota {dimensions = array<i32: 1>} : vector<16x128xi32>
    %2 = vector.broadcast %0 : vector<16x1xi32> to vector<16x128xi32>
    %3 = arith.cmpi eq, %1, %2 : vector<16x128xi32>
    %4 = arith.extui %3 : vector<16x128xi1> to vector<16x128xi32>
    %5 = arith.sitofp %4 : vector<16x128xi32> to vector<16x128xf32>
    %c0_1 = arith.constant 0 : index
    %c0_2 = arith.constant 0 : index
    %6 = vector.load %arg1[%c0_1, %c0_2] : memref<176x32xf32, #tpu.memory_space<vmem>>, vector<128x32xf32>
    %cst = arith.constant dense<0.000000e+00> : vector<16x32xf32>
    %7 = tpu.matmul %5, %6, %cst {dimension_numbers = #tpu.dot_dimension_numbers<[1], [0], [0], [1], [0, 0, 1, 1], [], []>} : vector<16x128xf32>, vector<128x32xf32>, vector<16x32xf32> -> vector<16x32xf32>
    %c128 = arith.constant 128 : index
    %c0_3 = arith.constant 0 : index
    %8 = vector.load %arg1[%c128, %c0_3] : memref<176x32xf32, #tpu.memory_space<vmem>>, vector<16x16xf32>
    %c144 = arith.constant 144 : index
    %c0_4 = arith.constant 0 : index
    %9 = vector.load %arg1[%c144, %c0_4] : memref<176x32xf32, #tpu.memory_space<vmem>>, vector<16x32xf32>
    %c160 = arith.constant 160 : index
    %c0_5 = arith.constant 0 : index
    %10 = vector.load %arg1[%c160, %c0_5] : memref<176x32xf32, #tpu.memory_space<vmem>>, vector<16x32xf32>
    %cst_6 = arith.constant dense<0.000000e+00> : vector<16xf32>
    %11 = vector.multi_reduction <add>, %7, %cst_6 [1] : vector<16x32xf32> to vector<16xf32>
    %12 = vector.shape_cast %11 : vector<16xf32> to vector<16x1xf32>
    %cst_7 = arith.constant 3.200000e+01 : f32
    %13 = vector.broadcast %cst_7 : f32 to vector<16x1xf32>
    %14 = arith.divf %12, %13 : vector<16x1xf32>
    %15 = vector.broadcast %14 : vector<16x1xf32> to vector<16x32xf32>
    %16 = arith.subf %7, %15 : vector<16x32xf32>
    %17 = arith.mulf %16, %16 : vector<16x32xf32>
    %cst_8 = arith.constant dense<0.000000e+00> : vector<16xf32>
    %18 = vector.multi_reduction <add>, %17, %cst_8 [1] : vector<16x32xf32> to vector<16xf32>
    %19 = vector.shape_cast %18 : vector<16xf32> to vector<16x1xf32>
    %cst_9 = arith.constant 3.200000e+01 : f32
    %20 = vector.broadcast %cst_9 : f32 to vector<16x1xf32>
    %21 = arith.divf %19, %20 : vector<16x1xf32>
    %22 = vector.broadcast %14 : vector<16x1xf32> to vector<16x32xf32>
    %23 = arith.subf %7, %22 : vector<16x32xf32>
    %cst_10 = arith.constant 9.99999974E-6 : f32
    %24 = vector.broadcast %cst_10 : f32 to vector<16x1xf32>
    %25 = arith.addf %21, %24 : vector<16x1xf32>
    %26 = math.rsqrt %25 : vector<16x1xf32>
    %27 = vector.broadcast %26 : vector<16x1xf32> to vector<16x32xf32>
    %28 = arith.mulf %23, %27 : vector<16x32xf32>
    %c0_11 = arith.constant 0 : index
    %c0_12 = arith.constant 0 : index
    %c0_13 = arith.constant 0 : index
    %29 = vector.load %arg2[%c0_11, %c0_12, %c0_13] : memref<2x33x192xf32, #tpu.memory_space<vmem>>, vector<1x32x192xf32>
    %30 = vector.shape_cast %29 : vector<1x32x192xf32> to vector<32x192xf32>
    %c0_14 = arith.constant 0 : index
    %c32 = arith.constant 32 : index
    %c0_15 = arith.constant 0 : index
    %31 = vector.load %arg2[%c0_14, %c32, %c0_15] : memref<2x33x192xf32, #tpu.memory_space<vmem>>, vector<1x1x192xf32>
    %32 = vector.shape_cast %31 : vector<1x1x192xf32> to vector<1x192xf32>
    %cst_16 = arith.constant dense<0.000000e+00> : vector<16x192xf32>
    %33 = tpu.matmul %28, %30, %cst_16 {dimension_numbers = #tpu.dot_dimension_numbers<[1], [0], [0], [1], [0, 0, 1, 1], [], []>} : vector<16x32xf32>, vector<32x192xf32>, vector<16x192xf32> -> vector<16x192xf32>
    %34 = vector.broadcast %32 : vector<1x192xf32> to vector<16x192xf32>
    %35 = arith.addf %33, %34 : vector<16x192xf32>
    %36 = vector.extract_strided_slice %35 {offsets = [0, 0], sizes = [16, 32], strides = [1, 1]} : vector<16x192xf32> to vector<16x32xf32>
    %37 = arith.mulf %36, %9 : vector<16x32xf32>
    %38 = vector.extract_strided_slice %35 {offsets = [0, 32], sizes = [16, 32], strides = [1, 1]} : vector<16x192xf32> to vector<16x32xf32>
    %39 = arith.mulf %38, %10 : vector<16x32xf32>
    %40 = arith.addf %37, %39 : vector<16x32xf32>
    %41 = vector.extract_strided_slice %35 {offsets = [0, 64], sizes = [16, 32], strides = [1, 1]} : vector<16x192xf32> to vector<16x32xf32>
    %42 = arith.mulf %41, %9 : vector<16x32xf32>
    %43 = vector.extract_strided_slice %35 {offsets = [0, 96], sizes = [16, 32], strides = [1, 1]} : vector<16x192xf32> to vector<16x32xf32>
    %44 = arith.mulf %43, %10 : vector<16x32xf32>
    %45 = arith.addf %42, %44 : vector<16x32xf32>
    %cst_17 = arith.constant 0.000000e+00 : f32
    %46 = vector.broadcast %cst_17 : f32 to vector<16x32xf32>
    %47 = vector.extract_strided_slice %40 {offsets = [0, 0], sizes = [16, 16], strides = [1, 1]} : vector<16x32xf32> to vector<16x16xf32>
    %48 = vector.extract_strided_slice %45 {offsets = [0, 0], sizes = [16, 16], strides = [1, 1]} : vector<16x32xf32> to vector<16x16xf32>
    %49 = vector.extract_strided_slice %35 {offsets = [0, 128], sizes = [16, 32], strides = [1, 1]} : vector<16x192xf32> to vector<16x32xf32>
    %cst_18 = arith.constant dense<0.000000e+00> : vector<16x16xf32>
    %50 = tpu.matmul %47, %48, %cst_18 {dimension_numbers = #tpu.dot_dimension_numbers<[1], [1], [0], [0], [0, 0, 1, 0], [], []>} : vector<16x16xf32>, vector<16x16xf32>, vector<16x16xf32> -> vector<16x16xf32>
    %51 = arith.addf %50, %8 : vector<16x16xf32>
    %cst_19 = arith.constant dense<0xFF800000> : vector<16xf32>
    %52 = vector.multi_reduction <maximumf>, %51, %cst_19 [1] : vector<16x16xf32> to vector<16xf32>
    %53 = vector.shape_cast %52 : vector<16xf32> to vector<16x1xf32>
    %54 = vector.broadcast %53 : vector<16x1xf32> to vector<16x16xf32>
    %55 = arith.subf %51, %54 : vector<16x16xf32>
    %56 = math.exp %55 : vector<16x16xf32>
    %cst_20 = arith.constant dense<0.000000e+00> : vector<16xf32>
    %57 = vector.multi_reduction <add>, %56, %cst_20 [1] : vector<16x16xf32> to vector<16xf32>
    %58 = vector.shape_cast %57 : vector<16xf32> to vector<16x1xf32>
    %59 = tpu.reciprocal %58 {approx = true} : vector<16x1xf32> -> vector<16x1xf32>
    %60 = vector.broadcast %59 : vector<16x1xf32> to vector<16x16xf32>
    %61 = arith.mulf %56, %60 : vector<16x16xf32>
    %cst_21 = arith.constant dense<0.000000e+00> : vector<16x32xf32>
    %62 = tpu.matmul %61, %49, %cst_21 {dimension_numbers = #tpu.dot_dimension_numbers<[1], [0], [0], [1], [0, 0, 1, 1], [], []>} : vector<16x16xf32>, vector<16x32xf32>, vector<16x32xf32> -> vector<16x32xf32>
    %63 = arith.addf %46, %62 : vector<16x32xf32>
    %64 = vector.extract_strided_slice %40 {offsets = [0, 16], sizes = [16, 16], strides = [1, 1]} : vector<16x32xf32> to vector<16x16xf32>
    %65 = vector.extract_strided_slice %45 {offsets = [0, 16], sizes = [16, 16], strides = [1, 1]} : vector<16x32xf32> to vector<16x16xf32>
    %66 = vector.extract_strided_slice %35 {offsets = [0, 160], sizes = [16, 32], strides = [1, 1]} : vector<16x192xf32> to vector<16x32xf32>
    %cst_22 = arith.constant dense<0.000000e+00> : vector<16x16xf32>
    %67 = tpu.matmul %64, %65, %cst_22 {dimension_numbers = #tpu.dot_dimension_numbers<[1], [1], [0], [0], [0, 0, 1, 0], [], []>} : vector<16x16xf32>, vector<16x16xf32>, vector<16x16xf32> -> vector<16x16xf32>
    %68 = arith.addf %67, %8 : vector<16x16xf32>
    %cst_23 = arith.constant dense<0xFF800000> : vector<16xf32>
    %69 = vector.multi_reduction <maximumf>, %68, %cst_23 [1] : vector<16x16xf32> to vector<16xf32>
    %70 = vector.shape_cast %69 : vector<16xf32> to vector<16x1xf32>
    %71 = vector.broadcast %70 : vector<16x1xf32> to vector<16x16xf32>
    %72 = arith.subf %68, %71 : vector<16x16xf32>
    %73 = math.exp %72 : vector<16x16xf32>
    %cst_24 = arith.constant dense<0.000000e+00> : vector<16xf32>
    %74 = vector.multi_reduction <add>, %73, %cst_24 [1] : vector<16x16xf32> to vector<16xf32>
    %75 = vector.shape_cast %74 : vector<16xf32> to vector<16x1xf32>
    %76 = tpu.reciprocal %75 {approx = true} : vector<16x1xf32> -> vector<16x1xf32>
    %77 = vector.broadcast %76 : vector<16x1xf32> to vector<16x16xf32>
    %78 = arith.mulf %73, %77 : vector<16x16xf32>
    %cst_25 = arith.constant dense<0.000000e+00> : vector<16x32xf32>
    %79 = tpu.matmul %78, %66, %cst_25 {dimension_numbers = #tpu.dot_dimension_numbers<[1], [0], [0], [1], [0, 0, 1, 1], [], []>} : vector<16x16xf32>, vector<16x32xf32>, vector<16x32xf32> -> vector<16x32xf32>
    %80 = arith.addf %63, %79 : vector<16x32xf32>
    %81 = arith.addf %7, %80 : vector<16x32xf32>
    %cst_26 = arith.constant dense<0.000000e+00> : vector<16xf32>
    %82 = vector.multi_reduction <add>, %81, %cst_26 [1] : vector<16x32xf32> to vector<16xf32>
    %83 = vector.shape_cast %82 : vector<16xf32> to vector<16x1xf32>
    %cst_27 = arith.constant 3.200000e+01 : f32
    %84 = vector.broadcast %cst_27 : f32 to vector<16x1xf32>
    %85 = arith.divf %83, %84 : vector<16x1xf32>
    %86 = vector.broadcast %85 : vector<16x1xf32> to vector<16x32xf32>
    %87 = arith.subf %81, %86 : vector<16x32xf32>
    %88 = arith.mulf %87, %87 : vector<16x32xf32>
    %cst_28 = arith.constant dense<0.000000e+00> : vector<16xf32>
    %89 = vector.multi_reduction <add>, %88, %cst_28 [1] : vector<16x32xf32> to vector<16xf32>
    %90 = vector.shape_cast %89 : vector<16xf32> to vector<16x1xf32>
    %cst_29 = arith.constant 3.200000e+01 : f32
    %91 = vector.broadcast %cst_29 : f32 to vector<16x1xf32>
    %92 = arith.divf %90, %91 : vector<16x1xf32>
    %93 = vector.broadcast %85 : vector<16x1xf32> to vector<16x32xf32>
    %94 = arith.subf %81, %93 : vector<16x32xf32>
    %cst_30 = arith.constant 9.99999974E-6 : f32
    %95 = vector.broadcast %cst_30 : f32 to vector<16x1xf32>
    %96 = arith.addf %92, %95 : vector<16x1xf32>
    %97 = math.rsqrt %96 : vector<16x1xf32>
    %98 = vector.broadcast %97 : vector<16x1xf32> to vector<16x32xf32>
    %99 = arith.mulf %94, %98 : vector<16x32xf32>
    %c0_31 = arith.constant 0 : index
    %c0_32 = arith.constant 0 : index
    %c0_33 = arith.constant 0 : index
    %100 = vector.load %arg3[%c0_31, %c0_32, %c0_33] : memref<2x184x64xf32, #tpu.memory_space<vmem>>, vector<1x32x64xf32>
    %101 = vector.shape_cast %100 : vector<1x32x64xf32> to vector<32x64xf32>
    %c0_34 = arith.constant 0 : index
    %c32_35 = arith.constant 32 : index
    %c0_36 = arith.constant 0 : index
    %102 = vector.load %arg3[%c0_34, %c32_35, %c0_36] : memref<2x184x64xf32, #tpu.memory_space<vmem>>, vector<1x64x64xf32>
    %103 = vector.shape_cast %102 : vector<1x64x64xf32> to vector<64x64xf32>
    %c0_37 = arith.constant 0 : index
    %c96 = arith.constant 96 : index
    %c0_38 = arith.constant 0 : index
    %104 = vector.load %arg3[%c0_37, %c96, %c0_38] : memref<2x184x64xf32, #tpu.memory_space<vmem>>, vector<1x64x32xf32>
    %105 = vector.shape_cast %104 : vector<1x64x32xf32> to vector<64x32xf32>
    %c0_39 = arith.constant 0 : index
    %c160_40 = arith.constant 160 : index
    %c0_41 = arith.constant 0 : index
    %106 = vector.load %arg3[%c0_39, %c160_40, %c0_41] : memref<2x184x64xf32, #tpu.memory_space<vmem>>, vector<1x1x64xf32>
    %107 = vector.shape_cast %106 : vector<1x1x64xf32> to vector<1x64xf32>
    %c0_42 = arith.constant 0 : index
    %c168 = arith.constant 168 : index
    %c0_43 = arith.constant 0 : index
    %108 = vector.load %arg3[%c0_42, %c168, %c0_43] : memref<2x184x64xf32, #tpu.memory_space<vmem>>, vector<1x1x64xf32>
    %109 = vector.shape_cast %108 : vector<1x1x64xf32> to vector<1x64xf32>
    %c0_44 = arith.constant 0 : index
    %c176 = arith.constant 176 : index
    %c0_45 = arith.constant 0 : index
    %110 = vector.load %arg3[%c0_44, %c176, %c0_45] : memref<2x184x64xf32, #tpu.memory_space<vmem>>, vector<1x1x32xf32>
    %111 = vector.shape_cast %110 : vector<1x1x32xf32> to vector<1x32xf32>
    %cst_46 = arith.constant dense<0.000000e+00> : vector<16x64xf32>
    %112 = tpu.matmul %99, %101, %cst_46 {dimension_numbers = #tpu.dot_dimension_numbers<[1], [0], [0], [1], [0, 0, 1, 1], [], []>} : vector<16x32xf32>, vector<32x64xf32>, vector<16x64xf32> -> vector<16x64xf32>
    %113 = vector.broadcast %107 : vector<1x64xf32> to vector<16x64xf32>
    %114 = arith.addf %112, %113 : vector<16x64xf32>
    %cst_47 = arith.constant 5.000000e-01 : f32
    %115 = vector.broadcast %cst_47 : f32 to vector<16x64xf32>
    %116 = arith.mulf %115, %114 : vector<16x64xf32>
    %cst_48 = arith.constant 0.707106769 : f32
    %117 = vector.broadcast %cst_48 : f32 to vector<16x64xf32>
    %118 = arith.mulf %114, %117 : vector<16x64xf32>
    %119 = math.absf %118 : vector<16x64xf32>
    %cst_49 = arith.constant 0.327591091 : f32
    %120 = vector.broadcast %cst_49 : f32 to vector<16x64xf32>
    %121 = arith.mulf %120, %119 : vector<16x64xf32>
    %cst_50 = arith.constant 1.000000e+00 : f32
    %122 = vector.broadcast %cst_50 : f32 to vector<16x64xf32>
    %123 = arith.addf %122, %121 : vector<16x64xf32>
    %cst_51 = arith.constant 1.000000e+00 : f32
    %124 = vector.broadcast %cst_51 : f32 to vector<16x64xf32>
    %125 = arith.divf %124, %123 : vector<16x64xf32>
    %cst_52 = arith.constant 1.06140542 : f32
    %126 = vector.broadcast %cst_52 : f32 to vector<16x64xf32>
    %127 = arith.mulf %126, %125 : vector<16x64xf32>
    %cst_53 = arith.constant -1.45315206 : f32
    %128 = vector.broadcast %cst_53 : f32 to vector<16x64xf32>
    %129 = arith.addf %127, %128 : vector<16x64xf32>
    %130 = arith.mulf %129, %125 : vector<16x64xf32>
    %cst_54 = arith.constant 1.42141378 : f32
    %131 = vector.broadcast %cst_54 : f32 to vector<16x64xf32>
    %132 = arith.addf %130, %131 : vector<16x64xf32>
    %133 = arith.mulf %132, %125 : vector<16x64xf32>
    %cst_55 = arith.constant -0.284496725 : f32
    %134 = vector.broadcast %cst_55 : f32 to vector<16x64xf32>
    %135 = arith.addf %133, %134 : vector<16x64xf32>
    %136 = arith.mulf %135, %125 : vector<16x64xf32>
    %cst_56 = arith.constant 0.254829586 : f32
    %137 = vector.broadcast %cst_56 : f32 to vector<16x64xf32>
    %138 = arith.addf %136, %137 : vector<16x64xf32>
    %139 = arith.mulf %138, %125 : vector<16x64xf32>
    %cst_57 = arith.constant 0.000000e+00 : f32
    %140 = vector.broadcast %cst_57 : f32 to vector<16x64xf32>
    %141 = arith.subf %140, %119 : vector<16x64xf32>
    %142 = arith.mulf %141, %119 : vector<16x64xf32>
    %143 = math.exp %142 : vector<16x64xf32>
    %144 = arith.mulf %139, %143 : vector<16x64xf32>
    %cst_58 = arith.constant 1.000000e+00 : f32
    %145 = vector.broadcast %cst_58 : f32 to vector<16x64xf32>
    %146 = arith.subf %145, %144 : vector<16x64xf32>
    %cst_59 = arith.constant 0.000000e+00 : f32
    %147 = vector.broadcast %cst_59 : f32 to vector<16x64xf32>
    %148 = arith.cmpf oge, %118, %147 : vector<16x64xf32>
    %cst_60 = arith.constant 0.000000e+00 : f32
    %149 = vector.broadcast %cst_60 : f32 to vector<16x64xf32>
    %150 = arith.subf %149, %146 : vector<16x64xf32>
    %151 = arith.select %148, %146, %150 : vector<16x64xi1>, vector<16x64xf32>
    %cst_61 = arith.constant 1.000000e+00 : f32
    %152 = vector.broadcast %cst_61 : f32 to vector<16x64xf32>
    %153 = arith.addf %152, %151 : vector<16x64xf32>
    %154 = arith.mulf %116, %153 : vector<16x64xf32>
    %cst_62 = arith.constant dense<0.000000e+00> : vector<16x64xf32>
    %155 = tpu.matmul %154, %103, %cst_62 {dimension_numbers = #tpu.dot_dimension_numbers<[1], [0], [0], [1], [0, 0, 1, 1], [], []>} : vector<16x64xf32>, vector<64x64xf32>, vector<16x64xf32> -> vector<16x64xf32>
    %156 = vector.broadcast %109 : vector<1x64xf32> to vector<16x64xf32>
    %157 = arith.addf %155, %156 : vector<16x64xf32>
    %cst_63 = arith.constant 5.000000e-01 : f32
    %158 = vector.broadcast %cst_63 : f32 to vector<16x64xf32>
    %159 = arith.mulf %158, %157 : vector<16x64xf32>
    %cst_64 = arith.constant 0.707106769 : f32
    %160 = vector.broadcast %cst_64 : f32 to vector<16x64xf32>
    %161 = arith.mulf %157, %160 : vector<16x64xf32>
    %162 = math.absf %161 : vector<16x64xf32>
    %cst_65 = arith.constant 0.327591091 : f32
    %163 = vector.broadcast %cst_65 : f32 to vector<16x64xf32>
    %164 = arith.mulf %163, %162 : vector<16x64xf32>
    %cst_66 = arith.constant 1.000000e+00 : f32
    %165 = vector.broadcast %cst_66 : f32 to vector<16x64xf32>
    %166 = arith.addf %165, %164 : vector<16x64xf32>
    %cst_67 = arith.constant 1.000000e+00 : f32
    %167 = vector.broadcast %cst_67 : f32 to vector<16x64xf32>
    %168 = arith.divf %167, %166 : vector<16x64xf32>
    %cst_68 = arith.constant 1.06140542 : f32
    %169 = vector.broadcast %cst_68 : f32 to vector<16x64xf32>
    %170 = arith.mulf %169, %168 : vector<16x64xf32>
    %cst_69 = arith.constant -1.45315206 : f32
    %171 = vector.broadcast %cst_69 : f32 to vector<16x64xf32>
    %172 = arith.addf %170, %171 : vector<16x64xf32>
    %173 = arith.mulf %172, %168 : vector<16x64xf32>
    %cst_70 = arith.constant 1.42141378 : f32
    %174 = vector.broadcast %cst_70 : f32 to vector<16x64xf32>
    %175 = arith.addf %173, %174 : vector<16x64xf32>
    %176 = arith.mulf %175, %168 : vector<16x64xf32>
    %cst_71 = arith.constant -0.284496725 : f32
    %177 = vector.broadcast %cst_71 : f32 to vector<16x64xf32>
    %178 = arith.addf %176, %177 : vector<16x64xf32>
    %179 = arith.mulf %178, %168 : vector<16x64xf32>
    %cst_72 = arith.constant 0.254829586 : f32
    %180 = vector.broadcast %cst_72 : f32 to vector<16x64xf32>
    %181 = arith.addf %179, %180 : vector<16x64xf32>
    %182 = arith.mulf %181, %168 : vector<16x64xf32>
    %cst_73 = arith.constant 0.000000e+00 : f32
    %183 = vector.broadcast %cst_73 : f32 to vector<16x64xf32>
    %184 = arith.subf %183, %162 : vector<16x64xf32>
    %185 = arith.mulf %184, %162 : vector<16x64xf32>
    %186 = math.exp %185 : vector<16x64xf32>
    %187 = arith.mulf %182, %186 : vector<16x64xf32>
    %cst_74 = arith.constant 1.000000e+00 : f32
    %188 = vector.broadcast %cst_74 : f32 to vector<16x64xf32>
    %189 = arith.subf %188, %187 : vector<16x64xf32>
    %cst_75 = arith.constant 0.000000e+00 : f32
    %190 = vector.broadcast %cst_75 : f32 to vector<16x64xf32>
    %191 = arith.cmpf oge, %161, %190 : vector<16x64xf32>
    %cst_76 = arith.constant 0.000000e+00 : f32
    %192 = vector.broadcast %cst_76 : f32 to vector<16x64xf32>
    %193 = arith.subf %192, %189 : vector<16x64xf32>
    %194 = arith.select %191, %189, %193 : vector<16x64xi1>, vector<16x64xf32>
    %cst_77 = arith.constant 1.000000e+00 : f32
    %195 = vector.broadcast %cst_77 : f32 to vector<16x64xf32>
    %196 = arith.addf %195, %194 : vector<16x64xf32>
    %197 = arith.mulf %159, %196 : vector<16x64xf32>
    %cst_78 = arith.constant dense<0.000000e+00> : vector<16x32xf32>
    %198 = tpu.matmul %197, %105, %cst_78 {dimension_numbers = #tpu.dot_dimension_numbers<[1], [0], [0], [1], [0, 0, 1, 1], [], []>} : vector<16x64xf32>, vector<64x32xf32>, vector<16x32xf32> -> vector<16x32xf32>
    %199 = arith.addf %81, %198 : vector<16x32xf32>
    %200 = vector.broadcast %111 : vector<1x32xf32> to vector<16x32xf32>
    %201 = arith.addf %199, %200 : vector<16x32xf32>
    %cst_79 = arith.constant dense<0.000000e+00> : vector<16xf32>
    %202 = vector.multi_reduction <add>, %201, %cst_79 [1] : vector<16x32xf32> to vector<16xf32>
    %203 = vector.shape_cast %202 : vector<16xf32> to vector<16x1xf32>
    %cst_80 = arith.constant 3.200000e+01 : f32
    %204 = vector.broadcast %cst_80 : f32 to vector<16x1xf32>
    %205 = arith.divf %203, %204 : vector<16x1xf32>
    %206 = vector.broadcast %205 : vector<16x1xf32> to vector<16x32xf32>
    %207 = arith.subf %201, %206 : vector<16x32xf32>
    %208 = arith.mulf %207, %207 : vector<16x32xf32>
    %cst_81 = arith.constant dense<0.000000e+00> : vector<16xf32>
    %209 = vector.multi_reduction <add>, %208, %cst_81 [1] : vector<16x32xf32> to vector<16xf32>
    %210 = vector.shape_cast %209 : vector<16xf32> to vector<16x1xf32>
    %cst_82 = arith.constant 3.200000e+01 : f32
    %211 = vector.broadcast %cst_82 : f32 to vector<16x1xf32>
    %212 = arith.divf %210, %211 : vector<16x1xf32>
    %213 = vector.broadcast %205 : vector<16x1xf32> to vector<16x32xf32>
    %214 = arith.subf %201, %213 : vector<16x32xf32>
    %cst_83 = arith.constant 9.99999974E-6 : f32
    %215 = vector.broadcast %cst_83 : f32 to vector<16x1xf32>
    %216 = arith.addf %212, %215 : vector<16x1xf32>
    %217 = math.rsqrt %216 : vector<16x1xf32>
    %218 = vector.broadcast %217 : vector<16x1xf32> to vector<16x32xf32>
    %219 = arith.mulf %214, %218 : vector<16x32xf32>
    %c1 = arith.constant 1 : index
    %c0_84 = arith.constant 0 : index
    %c0_85 = arith.constant 0 : index
    %220 = vector.load %arg2[%c1, %c0_84, %c0_85] : memref<2x33x192xf32, #tpu.memory_space<vmem>>, vector<1x32x192xf32>
    %221 = vector.shape_cast %220 : vector<1x32x192xf32> to vector<32x192xf32>
    %c1_86 = arith.constant 1 : index
    %c32_87 = arith.constant 32 : index
    %c0_88 = arith.constant 0 : index
    %222 = vector.load %arg2[%c1_86, %c32_87, %c0_88] : memref<2x33x192xf32, #tpu.memory_space<vmem>>, vector<1x1x192xf32>
    %223 = vector.shape_cast %222 : vector<1x1x192xf32> to vector<1x192xf32>
    %cst_89 = arith.constant dense<0.000000e+00> : vector<16x192xf32>
    %224 = tpu.matmul %219, %221, %cst_89 {dimension_numbers = #tpu.dot_dimension_numbers<[1], [0], [0], [1], [0, 0, 1, 1], [], []>} : vector<16x32xf32>, vector<32x192xf32>, vector<16x192xf32> -> vector<16x192xf32>
    %225 = vector.broadcast %223 : vector<1x192xf32> to vector<16x192xf32>
    %226 = arith.addf %224, %225 : vector<16x192xf32>
    %227 = vector.extract_strided_slice %226 {offsets = [0, 0], sizes = [16, 32], strides = [1, 1]} : vector<16x192xf32> to vector<16x32xf32>
    %228 = arith.mulf %227, %9 : vector<16x32xf32>
    %229 = vector.extract_strided_slice %226 {offsets = [0, 32], sizes = [16, 32], strides = [1, 1]} : vector<16x192xf32> to vector<16x32xf32>
    %230 = arith.mulf %229, %10 : vector<16x32xf32>
    %231 = arith.addf %228, %230 : vector<16x32xf32>
    %232 = vector.extract_strided_slice %226 {offsets = [0, 64], sizes = [16, 32], strides = [1, 1]} : vector<16x192xf32> to vector<16x32xf32>
    %233 = arith.mulf %232, %9 : vector<16x32xf32>
    %234 = vector.extract_strided_slice %226 {offsets = [0, 96], sizes = [16, 32], strides = [1, 1]} : vector<16x192xf32> to vector<16x32xf32>
    %235 = arith.mulf %234, %10 : vector<16x32xf32>
    %236 = arith.addf %233, %235 : vector<16x32xf32>
    %cst_90 = arith.constant 0.000000e+00 : f32
    %237 = vector.broadcast %cst_90 : f32 to vector<16x32xf32>
    %238 = vector.extract_strided_slice %231 {offsets = [0, 0], sizes = [16, 16], strides = [1, 1]} : vector<16x32xf32> to vector<16x16xf32>
    %239 = vector.extract_strided_slice %236 {offsets = [0, 0], sizes = [16, 16], strides = [1, 1]} : vector<16x32xf32> to vector<16x16xf32>
    %240 = vector.extract_strided_slice %226 {offsets = [0, 128], sizes = [16, 32], strides = [1, 1]} : vector<16x192xf32> to vector<16x32xf32>
    %cst_91 = arith.constant dense<0.000000e+00> : vector<16x16xf32>
    %241 = tpu.matmul %238, %239, %cst_91 {dimension_numbers = #tpu.dot_dimension_numbers<[1], [1], [0], [0], [0, 0, 1, 0], [], []>} : vector<16x16xf32>, vector<16x16xf32>, vector<16x16xf32> -> vector<16x16xf32>
    %242 = arith.addf %241, %8 : vector<16x16xf32>
    %cst_92 = arith.constant dense<0xFF800000> : vector<16xf32>
    %243 = vector.multi_reduction <maximumf>, %242, %cst_92 [1] : vector<16x16xf32> to vector<16xf32>
    %244 = vector.shape_cast %243 : vector<16xf32> to vector<16x1xf32>
    %245 = vector.broadcast %244 : vector<16x1xf32> to vector<16x16xf32>
    %246 = arith.subf %242, %245 : vector<16x16xf32>
    %247 = math.exp %246 : vector<16x16xf32>
    %cst_93 = arith.constant dense<0.000000e+00> : vector<16xf32>
    %248 = vector.multi_reduction <add>, %247, %cst_93 [1] : vector<16x16xf32> to vector<16xf32>
    %249 = vector.shape_cast %248 : vector<16xf32> to vector<16x1xf32>
    %250 = tpu.reciprocal %249 {approx = true} : vector<16x1xf32> -> vector<16x1xf32>
    %251 = vector.broadcast %250 : vector<16x1xf32> to vector<16x16xf32>
    %252 = arith.mulf %247, %251 : vector<16x16xf32>
    %cst_94 = arith.constant dense<0.000000e+00> : vector<16x32xf32>
    %253 = tpu.matmul %252, %240, %cst_94 {dimension_numbers = #tpu.dot_dimension_numbers<[1], [0], [0], [1], [0, 0, 1, 1], [], []>} : vector<16x16xf32>, vector<16x32xf32>, vector<16x32xf32> -> vector<16x32xf32>
    %254 = arith.addf %237, %253 : vector<16x32xf32>
    %255 = vector.extract_strided_slice %231 {offsets = [0, 16], sizes = [16, 16], strides = [1, 1]} : vector<16x32xf32> to vector<16x16xf32>
    %256 = vector.extract_strided_slice %236 {offsets = [0, 16], sizes = [16, 16], strides = [1, 1]} : vector<16x32xf32> to vector<16x16xf32>
    %257 = vector.extract_strided_slice %226 {offsets = [0, 160], sizes = [16, 32], strides = [1, 1]} : vector<16x192xf32> to vector<16x32xf32>
    %cst_95 = arith.constant dense<0.000000e+00> : vector<16x16xf32>
    %258 = tpu.matmul %255, %256, %cst_95 {dimension_numbers = #tpu.dot_dimension_numbers<[1], [1], [0], [0], [0, 0, 1, 0], [], []>} : vector<16x16xf32>, vector<16x16xf32>, vector<16x16xf32> -> vector<16x16xf32>
    %259 = arith.addf %258, %8 : vector<16x16xf32>
    %cst_96 = arith.constant dense<0xFF800000> : vector<16xf32>
    %260 = vector.multi_reduction <maximumf>, %259, %cst_96 [1] : vector<16x16xf32> to vector<16xf32>
    %261 = vector.shape_cast %260 : vector<16xf32> to vector<16x1xf32>
    %262 = vector.broadcast %261 : vector<16x1xf32> to vector<16x16xf32>
    %263 = arith.subf %259, %262 : vector<16x16xf32>
    %264 = math.exp %263 : vector<16x16xf32>
    %cst_97 = arith.constant dense<0.000000e+00> : vector<16xf32>
    %265 = vector.multi_reduction <add>, %264, %cst_97 [1] : vector<16x16xf32> to vector<16xf32>
    %266 = vector.shape_cast %265 : vector<16xf32> to vector<16x1xf32>
    %267 = tpu.reciprocal %266 {approx = true} : vector<16x1xf32> -> vector<16x1xf32>
    %268 = vector.broadcast %267 : vector<16x1xf32> to vector<16x16xf32>
    %269 = arith.mulf %264, %268 : vector<16x16xf32>
    %cst_98 = arith.constant dense<0.000000e+00> : vector<16x32xf32>
    %270 = tpu.matmul %269, %257, %cst_98 {dimension_numbers = #tpu.dot_dimension_numbers<[1], [0], [0], [1], [0, 0, 1, 1], [], []>} : vector<16x16xf32>, vector<16x32xf32>, vector<16x32xf32> -> vector<16x32xf32>
    %271 = arith.addf %254, %270 : vector<16x32xf32>
    %272 = arith.addf %201, %271 : vector<16x32xf32>
    %cst_99 = arith.constant dense<0.000000e+00> : vector<16xf32>
    %273 = vector.multi_reduction <add>, %272, %cst_99 [1] : vector<16x32xf32> to vector<16xf32>
    %274 = vector.shape_cast %273 : vector<16xf32> to vector<16x1xf32>
    %cst_100 = arith.constant 3.200000e+01 : f32
    %275 = vector.broadcast %cst_100 : f32 to vector<16x1xf32>
    %276 = arith.divf %274, %275 : vector<16x1xf32>
    %277 = vector.broadcast %276 : vector<16x1xf32> to vector<16x32xf32>
    %278 = arith.subf %272, %277 : vector<16x32xf32>
    %279 = arith.mulf %278, %278 : vector<16x32xf32>
    %cst_101 = arith.constant dense<0.000000e+00> : vector<16xf32>
    %280 = vector.multi_reduction <add>, %279, %cst_101 [1] : vector<16x32xf32> to vector<16xf32>
    %281 = vector.shape_cast %280 : vector<16xf32> to vector<16x1xf32>
    %cst_102 = arith.constant 3.200000e+01 : f32
    %282 = vector.broadcast %cst_102 : f32 to vector<16x1xf32>
    %283 = arith.divf %281, %282 : vector<16x1xf32>
    %284 = vector.broadcast %276 : vector<16x1xf32> to vector<16x32xf32>
    %285 = arith.subf %272, %284 : vector<16x32xf32>
    %cst_103 = arith.constant 9.99999974E-6 : f32
    %286 = vector.broadcast %cst_103 : f32 to vector<16x1xf32>
    %287 = arith.addf %283, %286 : vector<16x1xf32>
    %288 = math.rsqrt %287 : vector<16x1xf32>
    %289 = vector.broadcast %288 : vector<16x1xf32> to vector<16x32xf32>
    %290 = arith.mulf %285, %289 : vector<16x32xf32>
    %c1_104 = arith.constant 1 : index
    %c0_105 = arith.constant 0 : index
    %c0_106 = arith.constant 0 : index
    %291 = vector.load %arg3[%c1_104, %c0_105, %c0_106] : memref<2x184x64xf32, #tpu.memory_space<vmem>>, vector<1x32x64xf32>
    %292 = vector.shape_cast %291 : vector<1x32x64xf32> to vector<32x64xf32>
    %c1_107 = arith.constant 1 : index
    %c32_108 = arith.constant 32 : index
    %c0_109 = arith.constant 0 : index
    %293 = vector.load %arg3[%c1_107, %c32_108, %c0_109] : memref<2x184x64xf32, #tpu.memory_space<vmem>>, vector<1x64x64xf32>
    %294 = vector.shape_cast %293 : vector<1x64x64xf32> to vector<64x64xf32>
    %c1_110 = arith.constant 1 : index
    %c96_111 = arith.constant 96 : index
    %c0_112 = arith.constant 0 : index
    %295 = vector.load %arg3[%c1_110, %c96_111, %c0_112] : memref<2x184x64xf32, #tpu.memory_space<vmem>>, vector<1x64x32xf32>
    %296 = vector.shape_cast %295 : vector<1x64x32xf32> to vector<64x32xf32>
    %c1_113 = arith.constant 1 : index
    %c160_114 = arith.constant 160 : index
    %c0_115 = arith.constant 0 : index
    %297 = vector.load %arg3[%c1_113, %c160_114, %c0_115] : memref<2x184x64xf32, #tpu.memory_space<vmem>>, vector<1x1x64xf32>
    %298 = vector.shape_cast %297 : vector<1x1x64xf32> to vector<1x64xf32>
    %c1_116 = arith.constant 1 : index
    %c168_117 = arith.constant 168 : index
    %c0_118 = arith.constant 0 : index
    %299 = vector.load %arg3[%c1_116, %c168_117, %c0_118] : memref<2x184x64xf32, #tpu.memory_space<vmem>>, vector<1x1x64xf32>
    %300 = vector.shape_cast %299 : vector<1x1x64xf32> to vector<1x64xf32>
    %c1_119 = arith.constant 1 : index
    %c176_120 = arith.constant 176 : index
    %c0_121 = arith.constant 0 : index
    %301 = vector.load %arg3[%c1_119, %c176_120, %c0_121] : memref<2x184x64xf32, #tpu.memory_space<vmem>>, vector<1x1x32xf32>
    %302 = vector.shape_cast %301 : vector<1x1x32xf32> to vector<1x32xf32>
    %cst_122 = arith.constant dense<0.000000e+00> : vector<16x64xf32>
    %303 = tpu.matmul %290, %292, %cst_122 {dimension_numbers = #tpu.dot_dimension_numbers<[1], [0], [0], [1], [0, 0, 1, 1], [], []>} : vector<16x32xf32>, vector<32x64xf32>, vector<16x64xf32> -> vector<16x64xf32>
    %304 = vector.broadcast %298 : vector<1x64xf32> to vector<16x64xf32>
    %305 = arith.addf %303, %304 : vector<16x64xf32>
    %cst_123 = arith.constant 5.000000e-01 : f32
    %306 = vector.broadcast %cst_123 : f32 to vector<16x64xf32>
    %307 = arith.mulf %306, %305 : vector<16x64xf32>
    %cst_124 = arith.constant 0.707106769 : f32
    %308 = vector.broadcast %cst_124 : f32 to vector<16x64xf32>
    %309 = arith.mulf %305, %308 : vector<16x64xf32>
    %310 = math.absf %309 : vector<16x64xf32>
    %cst_125 = arith.constant 0.327591091 : f32
    %311 = vector.broadcast %cst_125 : f32 to vector<16x64xf32>
    %312 = arith.mulf %311, %310 : vector<16x64xf32>
    %cst_126 = arith.constant 1.000000e+00 : f32
    %313 = vector.broadcast %cst_126 : f32 to vector<16x64xf32>
    %314 = arith.addf %313, %312 : vector<16x64xf32>
    %cst_127 = arith.constant 1.000000e+00 : f32
    %315 = vector.broadcast %cst_127 : f32 to vector<16x64xf32>
    %316 = arith.divf %315, %314 : vector<16x64xf32>
    %cst_128 = arith.constant 1.06140542 : f32
    %317 = vector.broadcast %cst_128 : f32 to vector<16x64xf32>
    %318 = arith.mulf %317, %316 : vector<16x64xf32>
    %cst_129 = arith.constant -1.45315206 : f32
    %319 = vector.broadcast %cst_129 : f32 to vector<16x64xf32>
    %320 = arith.addf %318, %319 : vector<16x64xf32>
    %321 = arith.mulf %320, %316 : vector<16x64xf32>
    %cst_130 = arith.constant 1.42141378 : f32
    %322 = vector.broadcast %cst_130 : f32 to vector<16x64xf32>
    %323 = arith.addf %321, %322 : vector<16x64xf32>
    %324 = arith.mulf %323, %316 : vector<16x64xf32>
    %cst_131 = arith.constant -0.284496725 : f32
    %325 = vector.broadcast %cst_131 : f32 to vector<16x64xf32>
    %326 = arith.addf %324, %325 : vector<16x64xf32>
    %327 = arith.mulf %326, %316 : vector<16x64xf32>
    %cst_132 = arith.constant 0.254829586 : f32
    %328 = vector.broadcast %cst_132 : f32 to vector<16x64xf32>
    %329 = arith.addf %327, %328 : vector<16x64xf32>
    %330 = arith.mulf %329, %316 : vector<16x64xf32>
    %cst_133 = arith.constant 0.000000e+00 : f32
    %331 = vector.broadcast %cst_133 : f32 to vector<16x64xf32>
    %332 = arith.subf %331, %310 : vector<16x64xf32>
    %333 = arith.mulf %332, %310 : vector<16x64xf32>
    %334 = math.exp %333 : vector<16x64xf32>
    %335 = arith.mulf %330, %334 : vector<16x64xf32>
    %cst_134 = arith.constant 1.000000e+00 : f32
    %336 = vector.broadcast %cst_134 : f32 to vector<16x64xf32>
    %337 = arith.subf %336, %335 : vector<16x64xf32>
    %cst_135 = arith.constant 0.000000e+00 : f32
    %338 = vector.broadcast %cst_135 : f32 to vector<16x64xf32>
    %339 = arith.cmpf oge, %309, %338 : vector<16x64xf32>
    %cst_136 = arith.constant 0.000000e+00 : f32
    %340 = vector.broadcast %cst_136 : f32 to vector<16x64xf32>
    %341 = arith.subf %340, %337 : vector<16x64xf32>
    %342 = arith.select %339, %337, %341 : vector<16x64xi1>, vector<16x64xf32>
    %cst_137 = arith.constant 1.000000e+00 : f32
    %343 = vector.broadcast %cst_137 : f32 to vector<16x64xf32>
    %344 = arith.addf %343, %342 : vector<16x64xf32>
    %345 = arith.mulf %307, %344 : vector<16x64xf32>
    %cst_138 = arith.constant dense<0.000000e+00> : vector<16x64xf32>
    %346 = tpu.matmul %345, %294, %cst_138 {dimension_numbers = #tpu.dot_dimension_numbers<[1], [0], [0], [1], [0, 0, 1, 1], [], []>} : vector<16x64xf32>, vector<64x64xf32>, vector<16x64xf32> -> vector<16x64xf32>
    %347 = vector.broadcast %300 : vector<1x64xf32> to vector<16x64xf32>
    %348 = arith.addf %346, %347 : vector<16x64xf32>
    %cst_139 = arith.constant 5.000000e-01 : f32
    %349 = vector.broadcast %cst_139 : f32 to vector<16x64xf32>
    %350 = arith.mulf %349, %348 : vector<16x64xf32>
    %cst_140 = arith.constant 0.707106769 : f32
    %351 = vector.broadcast %cst_140 : f32 to vector<16x64xf32>
    %352 = arith.mulf %348, %351 : vector<16x64xf32>
    %353 = math.absf %352 : vector<16x64xf32>
    %cst_141 = arith.constant 0.327591091 : f32
    %354 = vector.broadcast %cst_141 : f32 to vector<16x64xf32>
    %355 = arith.mulf %354, %353 : vector<16x64xf32>
    %cst_142 = arith.constant 1.000000e+00 : f32
    %356 = vector.broadcast %cst_142 : f32 to vector<16x64xf32>
    %357 = arith.addf %356, %355 : vector<16x64xf32>
    %cst_143 = arith.constant 1.000000e+00 : f32
    %358 = vector.broadcast %cst_143 : f32 to vector<16x64xf32>
    %359 = arith.divf %358, %357 : vector<16x64xf32>
    %cst_144 = arith.constant 1.06140542 : f32
    %360 = vector.broadcast %cst_144 : f32 to vector<16x64xf32>
    %361 = arith.mulf %360, %359 : vector<16x64xf32>
    %cst_145 = arith.constant -1.45315206 : f32
    %362 = vector.broadcast %cst_145 : f32 to vector<16x64xf32>
    %363 = arith.addf %361, %362 : vector<16x64xf32>
    %364 = arith.mulf %363, %359 : vector<16x64xf32>
    %cst_146 = arith.constant 1.42141378 : f32
    %365 = vector.broadcast %cst_146 : f32 to vector<16x64xf32>
    %366 = arith.addf %364, %365 : vector<16x64xf32>
    %367 = arith.mulf %366, %359 : vector<16x64xf32>
    %cst_147 = arith.constant -0.284496725 : f32
    %368 = vector.broadcast %cst_147 : f32 to vector<16x64xf32>
    %369 = arith.addf %367, %368 : vector<16x64xf32>
    %370 = arith.mulf %369, %359 : vector<16x64xf32>
    %cst_148 = arith.constant 0.254829586 : f32
    %371 = vector.broadcast %cst_148 : f32 to vector<16x64xf32>
    %372 = arith.addf %370, %371 : vector<16x64xf32>
    %373 = arith.mulf %372, %359 : vector<16x64xf32>
    %cst_149 = arith.constant 0.000000e+00 : f32
    %374 = vector.broadcast %cst_149 : f32 to vector<16x64xf32>
    %375 = arith.subf %374, %353 : vector<16x64xf32>
    %376 = arith.mulf %375, %353 : vector<16x64xf32>
    %377 = math.exp %376 : vector<16x64xf32>
    %378 = arith.mulf %373, %377 : vector<16x64xf32>
    %cst_150 = arith.constant 1.000000e+00 : f32
    %379 = vector.broadcast %cst_150 : f32 to vector<16x64xf32>
    %380 = arith.subf %379, %378 : vector<16x64xf32>
    %cst_151 = arith.constant 0.000000e+00 : f32
    %381 = vector.broadcast %cst_151 : f32 to vector<16x64xf32>
    %382 = arith.cmpf oge, %352, %381 : vector<16x64xf32>
    %cst_152 = arith.constant 0.000000e+00 : f32
    %383 = vector.broadcast %cst_152 : f32 to vector<16x64xf32>
    %384 = arith.subf %383, %380 : vector<16x64xf32>
    %385 = arith.select %382, %380, %384 : vector<16x64xi1>, vector<16x64xf32>
    %cst_153 = arith.constant 1.000000e+00 : f32
    %386 = vector.broadcast %cst_153 : f32 to vector<16x64xf32>
    %387 = arith.addf %386, %385 : vector<16x64xf32>
    %388 = arith.mulf %350, %387 : vector<16x64xf32>
    %cst_154 = arith.constant dense<0.000000e+00> : vector<16x32xf32>
    %389 = tpu.matmul %388, %296, %cst_154 {dimension_numbers = #tpu.dot_dimension_numbers<[1], [0], [0], [1], [0, 0, 1, 1], [], []>} : vector<16x64xf32>, vector<64x32xf32>, vector<16x32xf32> -> vector<16x32xf32>
    %390 = arith.addf %272, %389 : vector<16x32xf32>
    %391 = vector.broadcast %302 : vector<1x32xf32> to vector<16x32xf32>
    %392 = arith.addf %390, %391 : vector<16x32xf32>
    %c0_155 = arith.constant 0 : index
    %c0_156 = arith.constant 0 : index
    %393 = vector.load %arg4[%c0_155, %c0_156] : memref<33x128xf32, #tpu.memory_space<vmem>>, vector<32x128xf32>
    %cst_157 = arith.constant dense<0.000000e+00> : vector<16x128xf32>
    %394 = tpu.matmul %392, %393, %cst_157 {dimension_numbers = #tpu.dot_dimension_numbers<[1], [0], [0], [1], [0, 0, 1, 1], [], []>} : vector<16x32xf32>, vector<32x128xf32>, vector<16x128xf32> -> vector<16x128xf32>
    %c32_158 = arith.constant 32 : index
    %c0_159 = arith.constant 0 : index
    %395 = vector.load %arg4[%c32_158, %c0_159] : memref<33x128xf32, #tpu.memory_space<vmem>>, vector<1x128xf32>
    %396 = vector.broadcast %395 : vector<1x128xf32> to vector<16x128xf32>
    %397 = arith.addf %394, %396 : vector<16x128xf32>
    %c0_160 = arith.constant 0 : index
    %c0_161 = arith.constant 0 : index
    %398 = vector.load %arg5[%c0_160, %c0_161] : memref<16x128xf32, #tpu.memory_space<vmem>>, vector<16x128xf32>
    tpu.vector_store %arg5[%c0_160, %c0_161], %397 {strides = array<i32>} : memref<16x128xf32, #tpu.memory_space<vmem>>, vector<16x128xf32>,
    return
  }
}

</mosaic_0001>

<llo_original>
// kernel: transformer_forward.1
$region0: #{transformer_forward.1}
  #allocation0 [shape = 'u32[]', space=smem, size = 0x4, offset = 0x4, fixed_abs, tag = 'smem constant byte address 0x4 - core index']
  #allocation1 [shape = 'u32[144,128]{1,0:T(1,128)}', space=vmem, size = 0x12000, scoped, tag = 'internal scratch']
  %s0 = inlined_call_operand.vmem [shape: s32[16,1], index: 0, kind: input, shape index: {}]
  %s1 = inlined_call_operand.vmem [shape: f32[176,32], index: 1, kind: input, shape index: {}]
  %s2 = inlined_call_operand.vmem [shape: f32[2,33,192], index: 2, kind: input, shape index: {}]
  %s3 = inlined_call_operand.vmem [shape: f32[2,184,64], index: 3, kind: input, shape index: {}]
  %s4 = inlined_call_operand.vmem [shape: f32[33,128], index: 4, kind: input, shape index: {}]
  %s5 = inlined_call_operand.hbm [shape: f32[16,128], index: 5, kind: output, shape index: {}]
  %s6 = sld [smem:[#allocation0]]
  $region30: #{transformer_forward.1} parent=0
    _
  %s8 = ssub.s32 1, %s6
  %s9 = scalar_select 0, %s8, %s6
  $region1: #{transformer_forward.1} parent=0
    #allocation2 [shape = 'u8[8192]{0}', space=vmem, size = 0x2000, scoped, tag = 'output window, operand 0, single buffered']
    #allocation3 [shape = 's32[1]{0}', space=sflag, size = 0x4, scoped, tag = 'scoped memory for transformer_forward.1']
    %10 = vsyncpa [#allocation3], 0
    // Predicated region
    $region2: #{transformer_forward.1} parent=1 // pred_check
      _
    $region3: #{transformer_forward.1} parent=1 // pred_check_branch
      %12 = sbr.rel (0) target = $region5
    $region4: #{transformer_forward.1} parent=1 // pred_region
      _
    $region5: #{transformer_forward.1} parent=1 // pred_fallthru
      _
    // Predicated region
    $region6: #{transformer_forward.1} parent=1 // pred_check
      _
    $region7: #{transformer_forward.1} parent=1 // pred_check_branch
      %14 = sbr.rel (0) target = $region9
    $region8: #{transformer_forward.1} parent=1 // pred_region
      _
    $region9: #{transformer_forward.1} parent=1 // pred_fallthru
      _
    // Predicated region
    $region10: #{transformer_forward.1} parent=1 // pred_check
      _
    $region11: #{transformer_forward.1} parent=1 // pred_check_branch
      %16 = sbr.rel (0) target = $region13
    $region12: #{transformer_forward.1} parent=1 // pred_region
      _
    $region13: #{transformer_forward.1} parent=1 // pred_fallthru
      _
    // Predicated region
    $region14: #{transformer_forward.1} parent=1 // pred_check
      _
    $region15: #{transformer_forward.1} parent=1 // pred_check_branch
      %18 = sbr.rel (0) target = $region17
    $region16: #{transformer_forward.1} parent=1 // pred_region
      _
    $region17: #{transformer_forward.1} parent=1 // pred_fallthru
      _
    // Predicated region
    $region18: #{transformer_forward.1} parent=1 // pred_check
      _
    $region19: #{transformer_forward.1} parent=1 // pred_check_branch
      %20 = sbr.rel (0) target = $region21
    $region20: #{transformer_forward.1} parent=1 // pred_region
      _
    $region21: #{transformer_forward.1} parent=1 // pred_fallthru
      _
    %v21 = vld [vmem:[%s0] sm:$0xff]
    %v22 = vld [vmem:[%s0 + $0x8] sm:$0xff]
    %v23 = vlaneseq
    %v24 = vand.u32 %v23, 127
    %25 = vset.pattern.permute.xlu0 0
    %26 = vperm.xlu0 %25, %v21
    %v27 = vpop.permute.xlu0 %26
    %28 = vset.pattern.permute.xlu0 0
    %29 = vperm.xlu0 %28, %v22
    %v30 = vpop.permute.xlu0 %29
    %vm31 = vcmp.eq.s32.totalorder %v24, %v27
    %vm32 = vcmp.eq.s32.totalorder %v24, %v30
    %v33 = vsel %vm31, 1, 0
    %v34 = vsel %vm32, 1, 0
    %v35 = vcvt.s32.f32 %v33
    %v36 = vcvt.s32.f32 %v34
    %v37 = vld [vmem:[%s1] sm:$0xff]
    %v38 = vld [vmem:[%s1 + $0x8] sm:$0xff]
    %v39 = vld [vmem:[%s1 + $0x10] sm:$0xff]
    %v40 = vld [vmem:[%s1 + $0x18] sm:$0xff]
    %v41 = vld [vmem:[%s1 + $0x20] sm:$0xff]
    %v42 = vld [vmem:[%s1 + $0x28] sm:$0xff]
    %v43 = vld [vmem:[%s1 + $0x30] sm:$0xff]
    %v44 = vld [vmem:[%s1 + $0x38] sm:$0xff]
    %v45 = vld [vmem:[%s1 + $0x40] sm:$0xff]
    %v46 = vld [vmem:[%s1 + $0x48] sm:$0xff]
    %v47 = vld [vmem:[%s1 + $0x50] sm:$0xff]
    %v48 = vld [vmem:[%s1 + $0x58] sm:$0xff]
    %v49 = vld [vmem:[%s1 + $0x60] sm:$0xff]
    %v50 = vld [vmem:[%s1 + $0x68] sm:$0xff]
    %v51 = vld [vmem:[%s1 + $0x70] sm:$0xff]
    %v52 = vld [vmem:[%s1 + $0x78] sm:$0xff]
    %53 = vmatprep.subr.mxu0 0.0
    %54 = vmatpush1.msra.mxu0 %v52
    %55 = vmatprep.subr.mxu0 0.0
    %56 = vmatpush1.msra.mxu0 %v51
    %57 = vmatprep.subr.mxu0 0.0
    %58 = vmatpush1.msra.mxu0 %v50
    %59 = vmatprep.subr.mxu0 0.0
    %60 = vmatpush1.msra.mxu0 %v49
    %61 = vmatprep.subr.mxu0 0.0
    %62 = vmatpush1.msra.mxu0 %v48
    %63 = vmatprep.subr.mxu0 0.0
    %64 = vmatpush1.msra.mxu0 %v47
    %65 = vmatprep.subr.mxu0 0.0
    %66 = vmatpush1.msra.mxu0 %v46
    %67 = vmatprep.subr.mxu0 0.0
    %68 = vmatpush1.msra.mxu0 %v45
    %69 = vmatprep.subr.mxu0 0.0
    %70 = vmatpush1.msra.mxu0 %v44
    %71 = vmatprep.subr.mxu0 0.0
    %72 = vmatpush1.msra.mxu0 %v43
    %73 = vmatprep.subr.mxu0 0.0
    %74 = vmatpush1.msra.mxu0 %v42
    %75 = vmatprep.subr.mxu0 0.0
    %76 = vmatpush1.msra.mxu0 %v41
    %77 = vmatprep.subr.mxu0 0.0
    %78 = vmatpush1.msra.mxu0 %v40
    %79 = vmatprep.subr.mxu0 0.0
    %80 = vmatpush1.msra.mxu0 %v39
    %81 = vmatprep.subr.mxu0 0.0
    %82 = vmatpush1.msra.mxu0 %v38
    %83 = vmatprep.subr.mxu0 0.0
    %84 = vmatpush1.msra.mxu0 %v37
    %85 = vmatprep.subr.mxu0 0.0
    %86 = vmatpush2.msra.mxu0 0.0
    %87 = vmatprep.subr.mxu0 0.0
    %88 = vmatpush2.msra.mxu0 0.0
    %89 = vmatprep.subr.mxu0 0.0
    %90 = vmatpush2.msra.mxu0 0.0
    %91 = vmatprep.subr.mxu0 0.0
    %92 = vmatpush2.msra.mxu0 0.0
    %93 = vmatprep.subr.mxu0 0.0
    %94 = vmatpush2.msra.mxu0 0.0
    %95 = vmatprep.subr.mxu0 0.0
    %96 = vmatpush2.msra.mxu0 0.0
    %97 = vmatprep.subr.mxu0 0.0
    %98 = vmatpush2.msra.mxu0 0.0
    %99 = vmatprep.subr.mxu0 0.0
    %100 = vmatpush2.msra.mxu0 0.0
    %101 = vmatprep.subr.mxu0 0.0
    %102 = vmatpush2.msra.mxu0 0.0
    %103 = vmatprep.subr.mxu0 0.0
    %104 = vmatpush2.msra.mxu0 0.0
    %105 = vmatprep.subr.mxu0 0.0
    %106 = vmatpush2.msra.mxu0 0.0
    %107 = vmatprep.subr.mxu0 0.0
    %108 = vmatpush2.msra.mxu0 0.0
    %109 = vmatprep.subr.mxu0 0.0
    %110 = vmatpush2.msra.mxu0 0.0
    %111 = vmatprep.subr.mxu0 0.0
    %112 = vmatpush2.msra.mxu0 0.0
    %113 = vmatprep.subr.mxu0 0.0
    %114 = vmatpush2.msra.mxu0 0.0
    %115 = vmatprep.subr.mxu0 0.0
    %116 = vmatpush2.msra.mxu0 0.0
    %117 = vmatprep.mubr.f32.mxu0 0.0
    %118 = vmatmul.mubr.f32.gmra.mxu0 %v35
    %v119 = vpop.f32.mrf.mxu0
    %v120 = vadd.f32 0.0, %v119
    %v121 = vpop.f32.mrf.mxu0
    %122 = vmatprep.mubr.f32.mxu0 0.0
    %123 = vmatmul.mubr.f32.gmra.mxu0 %v36
    %v124 = vpop.f32.mrf.mxu0
    %v125 = vadd.f32 0.0, %v124
    %v126 = vpop.f32.mrf.mxu0
    %127 = vdwg.mxu0
    %v128 = vld [vmem:[%s1 + $0x80] sm:$0xff]
    %v129 = vld [vmem:[%s1 + $0x88] sm:$0xff]
    %v130 = vld [vmem:[%s1 + $0x90] sm:$0xff]
    %v131 = vld [vmem:[%s1 + $0x98] sm:$0xff]
    %v132 = vld [vmem:[%s1 + $0xa0] sm:$0xff]
    %v133 = vld [vmem:[%s1 + $0xa8] sm:$0xff]
    %vm134 = vcmask 261120
    %v135 = vsel %vm134, %v120, 0.0
    %136 = vadd.xlane.f32.xlu0 %v135
    %v137 = vpop.xlane.xlu0 %136
    %v138 = vsel %vm134, %v125, 0.0
    %139 = vadd.xlane.f32.xlu0 %v138
    %v140 = vpop.xlane.xlu0 %139
    %v141 = vrcp.pop 32.0
    %v142 = vmul.f32 %v137, %v141
    %v143 = vmul.f32 %v140, %v141
    %v144 = vsub.f32 %v120, %v142
    %v145 = vsub.f32 %v125, %v143
    %v146 = vmul.f32 %v144, %v144
    %v147 = vmul.f32 %v145, %v145
    %v148 = vsel %vm134, %v146, 0.0
    %149 = vadd.xlane.f32.xlu0 %v148
    %v150 = vpop.xlane.xlu0 %149
    %v151 = vsel %vm134, %v147, 0.0
    %152 = vadd.xlane.f32.xlu0 %v151
    %v153 = vpop.xlane.xlu0 %152
    %v154 = vmul.f32 %v150, %v141
    %v155 = vmul.f32 %v153, %v141
    %v156 = vadd.f32 %v154, 1e-05
    %v157 = vadd.f32 %v155, 1e-05
    %v158 = vrsqrt.pop %v156
    %v159 = vrsqrt.pop %v157
    %v160 = vmul.f32 %v144, %v158
    %v161 = vmul.f32 %v145, %v159
    %v162 = vld [vmem:[%s2] sm:$0xff]
    %v163 = vld [vmem:[%s2 + $0x8] sm:$0xff]
    %v164 = vld [vmem:[%s2 + $0x10] sm:$0xff]
    %v165 = vld [vmem:[%s2 + $0x18] sm:$0xff]
    %v166 = vld [vmem:[%s2 + $0x20] sm:$0xff]
    %v167 = vld [vmem:[%s2 + $0x28] sm:$0xff]
    %v168 = vld [vmem:[%s2 + $0x30] sm:$0xff]
    %v169 = vld [vmem:[%s2 + $0x38] sm:$0xff]
    %s170 = scalar_lea.vmem %s2, 64
    %v171 = vld [vmem:[%s170] ss:$8 sm:$0x3]
    %v173 = vlaneseq
    %v174 = vshrl.u32 %v173, 7
    %v175 = vsub.s32 0, %v174
    %v176 = vrot.slane %v171, %v175
    %v177 = vlaneseq
    %v178 = vshrl.u32 %v177, 7
    %v179 = vsub.s32 1, %v178
    %v180 = vrot.slane %v171, %v179
    %v184 = vsel %vm134, %v160, 0
    %v187 = vsel %vm134, %v161, 0
    %189 = vmatprep.subr.mxu0 0.0
    %190 = vmatpush1.msra.mxu0 0.0
    %191 = vmatprep.subr.mxu0 0.0
    %192 = vmatpush1.msra.mxu0 0.0
    %193 = vmatprep.subr.mxu0 0.0
    %194 = vmatpush1.msra.mxu0 0.0
    %195 = vmatprep.subr.mxu0 0.0
    %196 = vmatpush1.msra.mxu0 0.0
    %197 = vmatprep.subr.mxu0 0.0
    %198 = vmatpush1.msra.mxu0 0.0
    %199 = vmatprep.subr.mxu0 0.0
    %200 = vmatpush1.msra.mxu0 0.0
    %201 = vmatprep.subr.mxu0 0.0
    %202 = vmatpush1.msra.mxu0 0.0
    %203 = vmatprep.subr.mxu0 0.0
    %204 = vmatpush1.msra.mxu0 0.0
    %205 = vmatprep.subr.mxu0 0.0
    %206 = vmatpush1.msra.mxu0 0.0
    %207 = vmatprep.subr.mxu0 0.0
    %208 = vmatpush1.msra.mxu0 0.0
    %209 = vmatprep.subr.mxu0 0.0
    %210 = vmatpush1.msra.mxu0 0.0
    %211 = vmatprep.subr.mxu0 0.0
    %212 = vmatpush1.msra.mxu0 0.0
    %213 = vmatprep.subr.mxu0 %v169
    %214 = vmatpush1.msra.mxu0 %v168
    %215 = vmatprep.subr.mxu0 %v167
    %216 = vmatpush1.msra.mxu0 %v166
    %217 = vmatprep.subr.mxu0 %v165
    %218 = vmatpush1.msra.mxu0 %v164
    %219 = vmatprep.subr.mxu0 %v163
    %220 = vmatpush1.msra.mxu0 %v162
    %221 = vmatprep.subr.mxu0 0.0
    %222 = vmatpush2.msra.mxu0 0.0
    %223 = vmatprep.subr.mxu0 0.0
    %224 = vmatpush2.msra.mxu0 0.0
    %225 = vmatprep.subr.mxu0 0.0
    %226 = vmatpush2.msra.mxu0 0.0
    %227 = vmatprep.subr.mxu0 0.0
    %228 = vmatpush2.msra.mxu0 0.0
    %229 = vmatprep.subr.mxu0 0.0
    %230 = vmatpush2.msra.mxu0 0.0
    %231 = vmatprep.subr.mxu0 0.0
    %232 = vmatpush2.msra.mxu0 0.0
    %233 = vmatprep.subr.mxu0 0.0
    %234 = vmatpush2.msra.mxu0 0.0
    %235 = vmatprep.subr.mxu0 0.0
    %236 = vmatpush2.msra.mxu0 0.0
    %237 = vmatprep.subr.mxu0 0.0
    %238 = vmatpush2.msra.mxu0 0.0
    %239 = vmatprep.subr.mxu0 0.0
    %240 = vmatpush2.msra.mxu0 0.0
    %241 = vmatprep.subr.mxu0 0.0
    %242 = vmatpush2.msra.mxu0 0.0
    %243 = vmatprep.subr.mxu0 0.0
    %244 = vmatpush2.msra.mxu0 0.0
    %245 = vmatprep.subr.mxu0 0.0
    %246 = vmatpush2.msra.mxu0 0.0
    %247 = vmatprep.subr.mxu0 0.0
    %248 = vmatpush2.msra.mxu0 0.0
    %249 = vmatprep.subr.mxu0 0.0
    %250 = vmatpush2.msra.mxu0 0.0
    %251 = vmatprep.subr.mxu0 0.0
    %252 = vmatpush2.msra.mxu0 0.0
    %253 = vmatprep.mubr.f32.mxu0 0.0
    %254 = vmatmul.mubr.f32.gmra.mxu0 %v184
    %v255 = vpop.f32.mrf.mxu0
    %v256 = vadd.f32 %v176, %v255
    %v257 = vpop.f32.mrf.mxu0
    %v258 = vadd.f32 %v180, %v257
    %259 = vmatprep.mubr.f32.mxu0 0.0
    %260 = vmatmul.mubr.f32.gmra.mxu0 %v187
    %v261 = vpop.f32.mrf.mxu0
    %v262 = vadd.f32 %v176, %v261
    %v263 = vpop.f32.mrf.mxu0
    %v264 = vadd.f32 %v180, %v263
    %265 = vdwg.mxu0
    %v266 = vmul.f32 %v256, %v130
    %v267 = vmul.f32 %v262, %v131
    %270 = vrot.lane.b32.xlu0 %v132, 32
    %v271 = vpop.permute.xlu0 %270
    %272 = vrot.lane.b32.xlu0 %v133, 32
    %v273 = vpop.permute.xlu0 %272
    %v276 = vmul.f32 %v256, %v271
    %v277 = vmul.f32 %v262, %v273
    %280 = vrot.lane.b32.xlu0 %v276, 96
    %v281 = vpop.permute.xlu0 %280
    %282 = vrot.lane.b32.xlu0 %v277, 96
    %v283 = vpop.permute.xlu0 %282
    %v286 = vadd.f32 %v266, %v281
    %v287 = vadd.f32 %v267, %v283
    %290 = vrot.lane.b32.xlu0 %v130, 64
    %v291 = vpop.permute.xlu0 %290
    %292 = vrot.lane.b32.xlu0 %v131, 64
    %v293 = vpop.permute.xlu0 %292
    %v296 = vmul.f32 %v256, %v291
    %v297 = vmul.f32 %v262, %v293
    %298 = vrot.lane.b32.xlu0 %v132, 96
    %v299 = vpop.permute.xlu0 %298
    %300 = vrot.lane.b32.xlu0 %v133, 96
    %v301 = vpop.permute.xlu0 %300
    %v304 = vmul.f32 %v256, %v299
    %v305 = vmul.f32 %v262, %v301
    %308 = vrot.lane.b32.xlu0 %v304, 96
    %v309 = vpop.permute.xlu0 %308
    %310 = vrot.lane.b32.xlu0 %v305, 96
    %v311 = vpop.permute.xlu0 %310
    %v314 = vadd.f32 %v296, %v309
    %v315 = vadd.f32 %v297, %v311
    %318 = vrot.lane.b32.xlu0 %v314, 64
    %v319 = vpop.permute.xlu0 %318
    %320 = vrot.lane.b32.xlu0 %v315, 64
    %v321 = vpop.permute.xlu0 %320
    %vm322 = vcmask 130048
    %v324 = vsel %vm322, %v286, 0
    %v327 = vsel %vm322, %v287, 0
    %v329 = vsel %vm322, %v319, 0
    %v331 = vsel %vm322, %v321, 0
    %333 = vmatprep.subr.mxu0 0.0
    %334 = vmatpush1.xpose.msra.mxu0 0.0
    %335 = vmatprep.subr.mxu0 0.0
    %336 = vmatpush1.xpose.msra.mxu0 0.0
    %337 = vmatprep.subr.mxu0 0.0
    %338 = vmatpush1.xpose.msra.mxu0 0.0
    %339 = vmatprep.subr.mxu0 0.0
    %340 = vmatpush1.xpose.msra.mxu0 0.0
    %341 = vmatprep.subr.mxu0 0.0
    %342 = vmatpush1.xpose.msra.mxu0 0.0
    %343 = vmatprep.subr.mxu0 0.0
    %344 = vmatpush1.xpose.msra.mxu0 0.0
    %345 = vmatprep.subr.mxu0 0.0
    %346 = vmatpush1.xpose.msra.mxu0 0.0
    %347 = vmatprep.subr.mxu0 0.0
    %348 = vmatpush1.xpose.msra.mxu0 0.0
    %349 = vmatprep.subr.mxu0 0.0
    %350 = vmatpush1.xpose.msra.mxu0 0.0
    %351 = vmatprep.subr.mxu0 0.0
    %352 = vmatpush1.xpose.msra.mxu0 0.0
    %353 = vmatprep.subr.mxu0 0.0
    %354 = vmatpush1.xpose.msra.mxu0 0.0
    %355 = vmatprep.subr.mxu0 0.0
    %356 = vmatpush1.xpose.msra.mxu0 0.0
    %357 = vmatprep.subr.mxu0 0.0
    %358 = vmatpush1.xpose.msra.mxu0 0.0
    %359 = vmatprep.subr.mxu0 0.0
    %360 = vmatpush1.xpose.msra.mxu0 0.0
    %361 = vmatprep.subr.mxu0 0.0
    %362 = vmatpush1.xpose.msra.mxu0 %v331
    %363 = vmatprep.subr.mxu0 0.0
    %364 = vmatpush1.xpose.msra.mxu0 %v329
    %365 = vmatprep.subr.mxu0 0.0
    %366 = vmatpush2.xpose.msra.mxu0 0.0
    %367 = vmatprep.subr.mxu0 0.0
    %368 = vmatpush2.xpose.msra.mxu0 0.0
    %369 = vmatprep.subr.mxu0 0.0
    %370 = vmatpush2.xpose.msra.mxu0 0.0
    %371 = vmatprep.subr.mxu0 0.0
    %372 = vmatpush2.xpose.msra.mxu0 0.0
    %373 = vmatprep.subr.mxu0 0.0
    %374 = vmatpush2.xpose.msra.mxu0 0.0
    %375 = vmatprep.subr.mxu0 0.0
    %376 = vmatpush2.xpose.msra.mxu0 0.0
    %377 = vmatprep.subr.mxu0 0.0
    %378 = vmatpush2.xpose.msra.mxu0 0.0
    %379 = vmatprep.subr.mxu0 0.0
    %380 = vmatpush2.xpose.msra.mxu0 0.0
    %381 = vmatprep.subr.mxu0 0.0
    %382 = vmatpush2.xpose.msra.mxu0 0.0
    %383 = vmatprep.subr.mxu0 0.0
    %384 = vmatpush2.xpose.msra.mxu0 0.0
    %385 = vmatprep.subr.mxu0 0.0
    %386 = vmatpush2.xpose.msra.mxu0 0.0
    %387 = vmatprep.subr.mxu0 0.0
    %388 = vmatpush2.xpose.msra.mxu0 0.0
    %389 = vmatprep.subr.mxu0 0.0
    %390 = vmatpush2.xpose.msra.mxu0 0.0
    %391 = vmatprep.subr.mxu0 0.0
    %392 = vmatpush2.xpose.msra.mxu0 0.0
    %393 = vmatprep.subr.mxu0 0.0
    %394 = vmatpush2.xpose.msra.mxu0 0.0
    %395 = vmatprep.subr.mxu0 0.0
    %396 = vmatpush2.xpose.msra.mxu0 0.0
    %397 = vmatprep.mubr.f32.mxu0 0.0
    %398 = vmatmul.mubr.f32.gmra.mxu0 %v324
    %v399 = vpop.f32.mrf.mxu0
    %v400 = vadd.f32 %v128, %v399
    %v401 = vpop.f32.mrf.mxu0
    %402 = vmatprep.mubr.f32.mxu0 0.0
    %403 = vmatmul.mubr.f32.gmra.mxu0 %v327
    %v404 = vpop.f32.mrf.mxu0
    %v405 = vadd.f32 %v129, %v404
    %v406 = vpop.f32.mrf.mxu0
    %407 = vdwg.mxu0
    %v408 = vsel %vm322, %v400, -inf
    %409 = vmax.xlane.f32.xlu0 %v408
    %v410 = vpop.xlane.xlu0 %409
    %v411 = vsel %vm322, %v405, -inf
    %412 = vmax.xlane.f32.xlu0 %v411
    %v413 = vpop.xlane.xlu0 %412
    %v414 = vsub.f32 %v400, %v410
    %v415 = vsub.f32 %v405, %v413
    %v416 = vmul.f32 %v414, 1.442695
    %v417 = vpow.pop %v416
    %v418 = vmul.f32 %v415, 1.442695
    %v419 = vpow.pop %v418
    %v420 = vsel %vm322, %v417, 0.0
    %421 = vadd.xlane.f32.xlu0 %v420
    %v422 = vpop.xlane.xlu0 %421
    %v423 = vsel %vm322, %v419, 0.0
    %424 = vadd.xlane.f32.xlu0 %v423
    %v425 = vpop.xlane.xlu0 %424
    %v426 = vrcp.pop %v422
    %v427 = vrcp.pop %v425
    %v428 = vmul.f32 %v417, %v426
    %v429 = vmul.f32 %v419, %v427
    %430 = vrot.lane.b32.xlu0 %v286, 112
    %v431 = vpop.permute.xlu0 %430
    %432 = vrot.lane.b32.xlu0 %v287, 112
    %v433 = vpop.permute.xlu0 %432
    %434 = vrot.lane.b32.xlu0 %v314, 48
    %v435 = vpop.permute.xlu0 %434
    %436 = vrot.lane.b32.xlu0 %v315, 48
    %v437 = vpop.permute.xlu0 %436
    %v438 = vsel %vm322, %v431, 0
    %v440 = vsel %vm322, %v433, 0
    %v442 = vsel %vm322, %v435, 0
    %v444 = vsel %vm322, %v437, 0
    %446 = vmatprep.subr.mxu0 0.0
    %447 = vmatpush1.xpose.msra.mxu0 0.0
    %448 = vmatprep.subr.mxu0 0.0
    %449 = vmatpush1.xpose.msra.mxu0 0.0
    %450 = vmatprep.subr.mxu0 0.0
    %451 = vmatpush1.xpose.msra.mxu0 0.0
    %452 = vmatprep.subr.mxu0 0.0
    %453 = vmatpush1.xpose.msra.mxu0 0.0
    %454 = vmatprep.subr.mxu0 0.0
    %455 = vmatpush1.xpose.msra.mxu0 0.0
    %456 = vmatprep.subr.mxu0 0.0
    %457 = vmatpush1.xpose.msra.mxu0 0.0
    %458 = vmatprep.subr.mxu0 0.0
    %459 = vmatpush1.xpose.msra.mxu0 0.0
    %460 = vmatprep.subr.mxu0 0.0
    %461 = vmatpush1.xpose.msra.mxu0 0.0
    %462 = vmatprep.subr.mxu0 0.0
    %463 = vmatpush1.xpose.msra.mxu0 0.0
    %464 = vmatprep.subr.mxu0 0.0
    %465 = vmatpush1.xpose.msra.mxu0 0.0
    %466 = vmatprep.subr.mxu0 0.0
    %467 = vmatpush1.xpose.msra.mxu0 0.0
    %468 = vmatprep.subr.mxu0 0.0
    %469 = vmatpush1.xpose.msra.mxu0 0.0
    %470 = vmatprep.subr.mxu0 0.0
    %471 = vmatpush1.xpose.msra.mxu0 0.0
    %472 = vmatprep.subr.mxu0 0.0
    %473 = vmatpush1.xpose.msra.mxu0 0.0
    %474 = vmatprep.subr.mxu0 0.0
    %475 = vmatpush1.xpose.msra.mxu0 %v444
    %476 = vmatprep.subr.mxu0 0.0
    %477 = vmatpush1.xpose.msra.mxu0 %v442
    %478 = vmatprep.subr.mxu0 0.0
    %479 = vmatpush2.xpose.msra.mxu0 0.0
    %480 = vmatprep.subr.mxu0 0.0
    %481 = vmatpush2.xpose.msra.mxu0 0.0
    %482 = vmatprep.subr.mxu0 0.0
    %483 = vmatpush2.xpose.msra.mxu0 0.0
    %484 = vmatprep.subr.mxu0 0.0
    %485 = vmatpush2.xpose.msra.mxu0 0.0
    %486 = vmatprep.subr.mxu0 0.0
    %487 = vmatpush2.xpose.msra.mxu0 0.0
    %488 = vmatprep.subr.mxu0 0.0
    %489 = vmatpush2.xpose.msra.mxu0 0.0
    %490 = vmatprep.subr.mxu0 0.0
    %491 = vmatpush2.xpose.msra.mxu0 0.0
    %492 = vmatprep.subr.mxu0 0.0
    %493 = vmatpush2.xpose.msra.mxu0 0.0
    %494 = vmatprep.subr.mxu0 0.0
    %495 = vmatpush2.xpose.msra.mxu0 0.0
    %496 = vmatprep.subr.mxu0 0.0
    %497 = vmatpush2.xpose.msra.mxu0 0.0
    %498 = vmatprep.subr.mxu0 0.0
    %499 = vmatpush2.xpose.msra.mxu0 0.0
    %500 = vmatprep.subr.mxu0 0.0
    %501 = vmatpush2.xpose.msra.mxu0 0.0
    %502 = vmatprep.subr.mxu0 0.0
    %503 = vmatpush2.xpose.msra.mxu0 0.0
    %504 = vmatprep.subr.mxu0 0.0
    %505 = vmatpush2.xpose.msra.mxu0 0.0
    %506 = vmatprep.subr.mxu0 0.0
    %507 = vmatpush2.xpose.msra.mxu0 0.0
    %508 = vmatprep.subr.mxu0 0.0
    %509 = vmatpush2.xpose.msra.mxu0 0.0
    %510 = vmatprep.mubr.f32.mxu0 0.0
    %511 = vmatmul.mubr.f32.gmra.mxu0 %v438
    %v512 = vpop.f32.mrf.mxu0
    %v513 = vadd.f32 %v128, %v512
    %v514 = vpop.f32.mrf.mxu0
    %515 = vmatprep.mubr.f32.mxu0 0.0
    %516 = vmatmul.mubr.f32.gmra.mxu0 %v440
    %v517 = vpop.f32.mrf.mxu0
    %v518 = vadd.f32 %v129, %v517
    %v519 = vpop.f32.mrf.mxu0
    %520 = vdwg.mxu0
    %v521 = vsel %vm322, %v513, -inf
    %522 = vmax.xlane.f32.xlu0 %v521
    %v523 = vpop.xlane.xlu0 %522
    %v524 = vsel %vm322, %v518, -inf
    %525 = vmax.xlane.f32.xlu0 %v524
    %v526 = vpop.xlane.xlu0 %525
    %v527 = vsub.f32 %v513, %v523
    %v528 = vsub.f32 %v518, %v526
    %v529 = vmul.f32 %v527, 1.442695
    %v530 = vpow.pop %v529
    %v531 = vmul.f32 %v528, 1.442695
    %v532 = vpow.pop %v531
    %v533 = vsel %vm322, %v530, 0.0
    %534 = vadd.xlane.f32.xlu0 %v533
    %v535 = vpop.xlane.xlu0 %534
    %v536 = vsel %vm322, %v532, 0.0
    %537 = vadd.xlane.f32.xlu0 %v536
    %v538 = vpop.xlane.xlu0 %537
    %v539 = vrcp.pop %v535
    %v540 = vrcp.pop %v538
    %v541 = vmul.f32 %v530, %v539
    %v542 = vmul.f32 %v532, %v540
    %545 = vrot.lane.b32.xlu0 %v258, 96
    %v546 = vpop.permute.xlu0 %545
    %547 = vrot.lane.b32.xlu0 %v264, 96
    %v548 = vpop.permute.xlu0 %547
    %v552 = vsel %vm322, %v541, 0
    %v555 = vsel %vm322, %v542, 0
    %557 = vmatprep.subr.mxu0 0.0
    %558 = vmatpush1.msra.mxu0 0.0
    %559 = vmatprep.subr.mxu0 0.0
    %560 = vmatpush1.msra.mxu0 0.0
    %561 = vmatprep.subr.mxu0 0.0
    %562 = vmatpush1.msra.mxu0 0.0
    %563 = vmatprep.subr.mxu0 0.0
    %564 = vmatpush1.msra.mxu0 0.0
    %565 = vmatprep.subr.mxu0 0.0
    %566 = vmatpush1.msra.mxu0 0.0
    %567 = vmatprep.subr.mxu0 0.0
    %568 = vmatpush1.msra.mxu0 0.0
    %569 = vmatprep.subr.mxu0 0.0
    %570 = vmatpush1.msra.mxu0 0.0
    %571 = vmatprep.subr.mxu0 0.0
    %572 = vmatpush1.msra.mxu0 0.0
    %573 = vmatprep.subr.mxu0 0.0
    %574 = vmatpush1.msra.mxu0 0.0
    %575 = vmatprep.subr.mxu0 0.0
    %576 = vmatpush1.msra.mxu0 0.0
    %577 = vmatprep.subr.mxu0 0.0
    %578 = vmatpush1.msra.mxu0 0.0
    %579 = vmatprep.subr.mxu0 0.0
    %580 = vmatpush1.msra.mxu0 0.0
    %581 = vmatprep.subr.mxu0 0.0
    %582 = vmatpush1.msra.mxu0 0.0
    %583 = vmatprep.subr.mxu0 0.0
    %584 = vmatpush1.msra.mxu0 0.0
    %585 = vmatprep.subr.mxu0 0.0
    %586 = vmatpush1.msra.mxu0 %v548
    %587 = vmatprep.subr.mxu0 0.0
    %588 = vmatpush1.msra.mxu0 %v546
    %589 = vmatprep.subr.mxu0 0.0
    %590 = vmatpush2.msra.mxu0 0.0
    %591 = vmatprep.subr.mxu0 0.0
    %592 = vmatpush2.msra.mxu0 0.0
    %593 = vmatprep.subr.mxu0 0.0
    %594 = vmatpush2.msra.mxu0 0.0
    %595 = vmatprep.subr.mxu0 0.0
    %596 = vmatpush2.msra.mxu0 0.0
    %597 = vmatprep.subr.mxu0 0.0
    %598 = vmatpush2.msra.mxu0 0.0
    %599 = vmatprep.subr.mxu0 0.0
    %600 = vmatpush2.msra.mxu0 0.0
    %601 = vmatprep.subr.mxu0 0.0
    %602 = vmatpush2.msra.mxu0 0.0
    %603 = vmatprep.subr.mxu0 0.0
    %604 = vmatpush2.msra.mxu0 0.0
    %605 = vmatprep.subr.mxu0 0.0
    %606 = vmatpush2.msra.mxu0 0.0
    %607 = vmatprep.subr.mxu0 0.0
    %608 = vmatpush2.msra.mxu0 0.0
    %609 = vmatprep.subr.mxu0 0.0
    %610 = vmatpush2.msra.mxu0 0.0
    %611 = vmatprep.subr.mxu0 0.0
    %612 = vmatpush2.msra.mxu0 0.0
    %613 = vmatprep.subr.mxu0 0.0
    %614 = vmatpush2.msra.mxu0 0.0
    %615 = vmatprep.subr.mxu0 0.0
    %616 = vmatpush2.msra.mxu0 0.0
    %617 = vmatprep.subr.mxu0 0.0
    %618 = vmatpush2.msra.mxu0 0.0
    %619 = vmatprep.subr.mxu0 0.0
    %620 = vmatpush2.msra.mxu0 0.0
    %621 = vmatprep.mubr.f32.mxu0 0.0
    %622 = vmatmul.mubr.f32.gmra.mxu0 %v552
    %v623 = vpop.f32.mrf.mxu0
    %v624 = vadd.f32 0.0, %v623
    %v625 = vpop.f32.mrf.mxu0
    %626 = vmatprep.mubr.f32.mxu0 0.0
    %627 = vmatmul.mubr.f32.gmra.mxu0 %v555
    %v628 = vpop.f32.mrf.mxu0
    %v629 = vadd.f32 0.0, %v628
    %v630 = vpop.f32.mrf.mxu0
    %631 = vdwg.mxu0
    %v633 = vsel %vm322, %v428, 0
    %v636 = vsel %vm322, %v429, 0
    %638 = vmatprep.subr.mxu0 0.0
    %639 = vmatpush1.msra.mxu0 0.0
    %640 = vmatprep.subr.mxu0 0.0
    %641 = vmatpush1.msra.mxu0 0.0
    %642 = vmatprep.subr.mxu0 0.0
    %643 = vmatpush1.msra.mxu0 0.0
    %644 = vmatprep.subr.mxu0 0.0
    %645 = vmatpush1.msra.mxu0 0.0
    %646 = vmatprep.subr.mxu0 0.0
    %647 = vmatpush1.msra.mxu0 0.0
    %648 = vmatprep.subr.mxu0 0.0
    %649 = vmatpush1.msra.mxu0 0.0
    %650 = vmatprep.subr.mxu0 0.0
    %651 = vmatpush1.msra.mxu0 0.0
    %652 = vmatprep.subr.mxu0 0.0
    %653 = vmatpush1.msra.mxu0 0.0
    %654 = vmatprep.subr.mxu0 0.0
    %655 = vmatpush1.msra.mxu0 0.0
    %656 = vmatprep.subr.mxu0 0.0
    %657 = vmatpush1.msra.mxu0 0.0
    %658 = vmatprep.subr.mxu0 0.0
    %659 = vmatpush1.msra.mxu0 0.0
    %660 = vmatprep.subr.mxu0 0.0
    %661 = vmatpush1.msra.mxu0 0.0
    %662 = vmatprep.subr.mxu0 0.0
    %663 = vmatpush1.msra.mxu0 0.0
    %664 = vmatprep.subr.mxu0 0.0
    %665 = vmatpush1.msra.mxu0 0.0
    %666 = vmatprep.subr.mxu0 0.0
    %667 = vmatpush1.msra.mxu0 %v264
    %668 = vmatprep.subr.mxu0 0.0
    %669 = vmatpush1.msra.mxu0 %v258
    %670 = vmatprep.subr.mxu0 0.0
    %671 = vmatpush2.msra.mxu0 0.0
    %672 = vmatprep.subr.mxu0 0.0
    %673 = vmatpush2.msra.mxu0 0.0
    %674 = vmatprep.subr.mxu0 0.0
    %675 = vmatpush2.msra.mxu0 0.0
    %676 = vmatprep.subr.mxu0 0.0
    %677 = vmatpush2.msra.mxu0 0.0
    %678 = vmatprep.subr.mxu0 0.0
    %679 = vmatpush2.msra.mxu0 0.0
    %680 = vmatprep.subr.mxu0 0.0
    %681 = vmatpush2.msra.mxu0 0.0
    %682 = vmatprep.subr.mxu0 0.0
    %683 = vmatpush2.msra.mxu0 0.0
    %684 = vmatprep.subr.mxu0 0.0
    %685 = vmatpush2.msra.mxu0 0.0
    %686 = vmatprep.subr.mxu0 0.0
    %687 = vmatpush2.msra.mxu0 0.0
    %688 = vmatprep.subr.mxu0 0.0
    %689 = vmatpush2.msra.mxu0 0.0
    %690 = vmatprep.subr.mxu0 0.0
    %691 = vmatpush2.msra.mxu0 0.0
    %692 = vmatprep.subr.mxu0 0.0
    %693 = vmatpush2.msra.mxu0 0.0
    %694 = vmatprep.subr.mxu0 0.0
    %695 = vmatpush2.msra.mxu0 0.0
    %696 = vmatprep.subr.mxu0 0.0
    %697 = vmatpush2.msra.mxu0 0.0
    %698 = vmatprep.subr.mxu0 0.0
    %699 = vmatpush2.msra.mxu0 0.0
    %700 = vmatprep.subr.mxu0 0.0
    %701 = vmatpush2.msra.mxu0 0.0
    %702 = vmatprep.mubr.f32.mxu0 0.0
    %703 = vmatmul.mubr.f32.gmra.mxu0 %v633
    %v704 = vpop.f32.mrf.mxu0
    %v705 = vadd.f32 %v624, %v704
    %v706 = vpop.f32.mrf.mxu0
    %707 = vmatprep.mubr.f32.mxu0 0.0
    %708 = vmatmul.mubr.f32.gmra.mxu0 %v636
    %v709 = vpop.f32.mrf.mxu0
    %v710 = vadd.f32 %v629, %v709
    %v711 = vpop.f32.mrf.mxu0
    %712 = vdwg.mxu0
    %v713 = vadd.f32 %v120, %v705
    %v714 = vadd.f32 %v125, %v710
    %v715 = vsel %vm134, %v713, 0.0
    %716 = vadd.xlane.f32.xlu0 %v715
    %v717 = vpop.xlane.xlu0 %716
    %v718 = vsel %vm134, %v714, 0.0
    %719 = vadd.xlane.f32.xlu0 %v718
    %v720 = vpop.xlane.xlu0 %719
    %v721 = vmul.f32 %v717, %v141
    %v722 = vmul.f32 %v720, %v141
    %v723 = vsub.f32 %v713, %v721
    %v724 = vsub.f32 %v714, %v722
    %v725 = vmul.f32 %v723, %v723
    %v726 = vmul.f32 %v724, %v724
    %v727 = vsel %vm134, %v725, 0.0
    %728 = vadd.xlane.f32.xlu0 %v727
    %v729 = vpop.xlane.xlu0 %728
    %v730 = vsel %vm134, %v726, 0.0
    %731 = vadd.xlane.f32.xlu0 %v730
    %v732 = vpop.xlane.xlu0 %731
    %v733 = vmul.f32 %v729, %v141
    %v734 = vmul.f32 %v732, %v141
    %v735 = vadd.f32 %v733, 1e-05
    %v736 = vadd.f32 %v734, 1e-05
    %v737 = vrsqrt.pop %v735
    %v738 = vrsqrt.pop %v736
    %v739 = vmul.f32 %v723, %v737
    %v740 = vmul.f32 %v724, %v738
    %v741 = vld [vmem:[%s3] sm:$0xff]
    %v742 = vld [vmem:[%s3 + $0x8] sm:$0xff]
    %v743 = vld [vmem:[%s3 + $0x10] sm:$0xff]
    %v744 = vld [vmem:[%s3 + $0x18] sm:$0xff]
    %v745 = vld [vmem:[%s3 + $0x20] sm:$0xff]
    %v746 = vld [vmem:[%s3 + $0x28] sm:$0xff]
    %v747 = vld [vmem:[%s3 + $0x30] sm:$0xff]
    %v748 = vld [vmem:[%s3 + $0x38] sm:$0xff]
    %v749 = vld [vmem:[%s3 + $0x40] sm:$0xff]
    %v750 = vld [vmem:[%s3 + $0x48] sm:$0xff]
    %v751 = vld [vmem:[%s3 + $0x50] sm:$0xff]
    %v752 = vld [vmem:[%s3 + $0x58] sm:$0xff]
    %v753 = vld [vmem:[%s3 + $0x60] sm:$0xff]
    %v754 = vld [vmem:[%s3 + $0x68] sm:$0xff]
    %v755 = vld [vmem:[%s3 + $0x70] sm:$0xff]
    %v756 = vld [vmem:[%s3 + $0x78] sm:$0xff]
    %v757 = vld [vmem:[%s3 + $0x80] sm:$0xff]
    %v758 = vld [vmem:[%s3 + $0x88] sm:$0xff]
    %v759 = vld [vmem:[%s3 + $0x90] sm:$0xff]
    %v760 = vld [vmem:[%s3 + $0x98] sm:$0xff]
    %v761 = vld [vmem:[%s3 + $0xa0] sm:$0x1]
    %v762 = vld [vmem:[%s3 + $0xa8] sm:$0x1]
    %v763 = vld [vmem:[%s3 + $0xb0] sm:$0x1]
    %v764 = vlaneseq
    %v765 = vshrl.u32 %v764, 7
    %v766 = vsub.s32 0, %v765
    %v767 = vrot.slane %v761, %v766
    %v769 = vsel %vm134, %v739, 0
    %v772 = vsel %vm134, %v740, 0
    %774 = vmatprep.subr.mxu0 0.0
    %775 = vmatpush1.msra.mxu0 0.0
    %776 = vmatprep.subr.mxu0 0.0
    %777 = vmatpush1.msra.mxu0 0.0
    %778 = vmatprep.subr.mxu0 0.0
    %779 = vmatpush1.msra.mxu0 0.0
    %780 = vmatprep.subr.mxu0 0.0
    %781 = vmatpush1.msra.mxu0 0.0
    %782 = vmatprep.subr.mxu0 0.0
    %783 = vmatpush1.msra.mxu0 0.0
    %784 = vmatprep.subr.mxu0 0.0
    %785 = vmatpush1.msra.mxu0 0.0
    %786 = vmatprep.subr.mxu0 0.0
    %787 = vmatpush1.msra.mxu0 0.0
    %788 = vmatprep.subr.mxu0 0.0
    %789 = vmatpush1.msra.mxu0 0.0
    %790 = vmatprep.subr.mxu0 0.0
    %791 = vmatpush1.msra.mxu0 0.0
    %792 = vmatprep.subr.mxu0 0.0
    %793 = vmatpush1.msra.mxu0 0.0
    %794 = vmatprep.subr.mxu0 0.0
    %795 = vmatpush1.msra.mxu0 0.0
    %796 = vmatprep.subr.mxu0 0.0
    %797 = vmatpush1.msra.mxu0 0.0
    %798 = vmatprep.subr.mxu0 0.0
    %799 = vmatpush1.msra.mxu0 %v744
    %800 = vmatprep.subr.mxu0 0.0
    %801 = vmatpush1.msra.mxu0 %v743
    %802 = vmatprep.subr.mxu0 0.0
    %803 = vmatpush1.msra.mxu0 %v742
    %804 = vmatprep.subr.mxu0 0.0
    %805 = vmatpush1.msra.mxu0 %v741
    %806 = vmatprep.subr.mxu0 0.0
    %807 = vmatpush2.msra.mxu0 0.0
    %808 = vmatprep.subr.mxu0 0.0
    %809 = vmatpush2.msra.mxu0 0.0
    %810 = vmatprep.subr.mxu0 0.0
    %811 = vmatpush2.msra.mxu0 0.0
    %812 = vmatprep.subr.mxu0 0.0
    %813 = vmatpush2.msra.mxu0 0.0
    %814 = vmatprep.subr.mxu0 0.0
    %815 = vmatpush2.msra.mxu0 0.0
    %816 = vmatprep.subr.mxu0 0.0
    %817 = vmatpush2.msra.mxu0 0.0
    %818 = vmatprep.subr.mxu0 0.0
    %819 = vmatpush2.msra.mxu0 0.0
    %820 = vmatprep.subr.mxu0 0.0
    %821 = vmatpush2.msra.mxu0 0.0
    %822 = vmatprep.subr.mxu0 0.0
    %823 = vmatpush2.msra.mxu0 0.0
    %824 = vmatprep.subr.mxu0 0.0
    %825 = vmatpush2.msra.mxu0 0.0
    %826 = vmatprep.subr.mxu0 0.0
    %827 = vmatpush2.msra.mxu0 0.0
    %828 = vmatprep.subr.mxu0 0.0
    %829 = vmatpush2.msra.mxu0 0.0
    %830 = vmatprep.subr.mxu0 0.0
    %831 = vmatpush2.msra.mxu0 0.0
    %832 = vmatprep.subr.mxu0 0.0
    %833 = vmatpush2.msra.mxu0 0.0
    %834 = vmatprep.subr.mxu0 0.0
    %835 = vmatpush2.msra.mxu0 0.0
    %836 = vmatprep.subr.mxu0 0.0
    %837 = vmatpush2.msra.mxu0 0.0
    %838 = vmatprep.mubr.f32.mxu0 0.0
    %839 = vmatmul.mubr.f32.gmra.mxu0 %v769
    %v840 = vpop.f32.mrf.mxu0
    %v841 = vadd.f32 %v767, %v840
    %v842 = vpop.f32.mrf.mxu0
    %843 = vmatprep.mubr.f32.mxu0 0.0
    %844 = vmatmul.mubr.f32.gmra.mxu0 %v772
    %v845 = vpop.f32.mrf.mxu0
    %v846 = vadd.f32 %v767, %v845
    %v847 = vpop.f32.mrf.mxu0
    %848 = vdwg.mxu0
    %v849 = vmul.f32 %v841, 0.5
    %v850 = vmul.f32 %v846, 0.5
    %v851 = vmul.f32 %v841, 0.70710677
    %v852 = vmul.f32 %v846, 0.70710677
    %v853 = vand.u32 2147483647, %v851
    %v854 = vand.u32 2147483647, %v852
    %v855 = vmul.f32 %v853, 0.3275911
    %v856 = vmul.f32 %v854, 0.3275911
    %v857 = vadd.f32 %v855, 1.0
    %v858 = vadd.f32 %v856, 1.0
    %v859 = vrcp.pop %v857
    %v860 = vmul.f32 1.0, %v859
    %v861 = vrcp.pop %v858
    %v862 = vmul.f32 1.0, %v861
    %v863 = vmul.f32 %v860, 1.0614054
    %v864 = vmul.f32 %v862, 1.0614054
    %v865 = vadd.f32 %v863, -1.4531521
    %v866 = vadd.f32 %v864, -1.4531521
    %v867 = vmul.f32 %v865, %v860
    %v868 = vmul.f32 %v866, %v862
    %v869 = vadd.f32 %v867, 1.4214138
    %v870 = vadd.f32 %v868, 1.4214138
    %v871 = vmul.f32 %v869, %v860
    %v872 = vmul.f32 %v870, %v862
    %v873 = vadd.f32 %v871, -0.28449672
    %v874 = vadd.f32 %v872, -0.28449672
    %v875 = vmul.f32 %v873, %v860
    %v876 = vmul.f32 %v874, %v862
    %v877 = vadd.f32 %v875, 0.2548296
    %v878 = vadd.f32 %v876, 0.2548296
    %v879 = vmul.f32 %v877, %v860
    %v880 = vmul.f32 %v878, %v862
    %v881 = vsub.f32 0.0, %v853
    %v882 = vsub.f32 0.0, %v854
    %v883 = vmul.f32 %v881, %v853
    %v884 = vmul.f32 %v882, %v854
    %v885 = vmul.f32 %v883, 1.442695
    %v886 = vpow.pop %v885
    %v887 = vmul.f32 %v884, 1.442695
    %v888 = vpow.pop %v887
    %v889 = vmul.f32 %v879, %v886
    %v890 = vmul.f32 %v880, %v888
    %v891 = vsub.f32 1.0, %v889
    %v892 = vsub.f32 1.0, %v890
    %vm893 = vcmp.ge.f32.partialorder %v851, 0.0
    %vm894 = vcmp.ge.f32.partialorder %v852, 0.0
    %v895 = vsub.f32 0.0, %v891
    %v896 = vsub.f32 0.0, %v892
    %v897 = vsel %vm893, %v891, %v895
    %v898 = vsel %vm894, %v892, %v896
    %v899 = vadd.f32 %v897, 1.0
    %v900 = vadd.f32 %v898, 1.0
    %v901 = vmul.f32 %v849, %v899
    %v902 = vmul.f32 %v850, %v900
    %v903 = vlaneseq
    %v904 = vshrl.u32 %v903, 7
    %v905 = vsub.s32 0, %v904
    %v906 = vrot.slane %v762, %v905
    %vm907 = vcmask 523264
    %v909 = vsel %vm907, %v901, 0
    %v912 = vsel %vm907, %v902, 0
    %914 = vmatprep.subr.mxu0 0.0
    %915 = vmatpush1.msra.mxu0 0.0
    %916 = vmatprep.subr.mxu0 0.0
    %917 = vmatpush1.msra.mxu0 0.0
    %918 = vmatprep.subr.mxu0 0.0
    %919 = vmatpush1.msra.mxu0 0.0
    %920 = vmatprep.subr.mxu0 0.0
    %921 = vmatpush1.msra.mxu0 0.0
    %922 = vmatprep.subr.mxu0 0.0
    %923 = vmatpush1.msra.mxu0 0.0
    %924 = vmatprep.subr.mxu0 0.0
    %925 = vmatpush1.msra.mxu0 0.0
    %926 = vmatprep.subr.mxu0 0.0
    %927 = vmatpush1.msra.mxu0 0.0
    %928 = vmatprep.subr.mxu0 0.0
    %929 = vmatpush1.msra.mxu0 0.0
    %930 = vmatprep.subr.mxu0 0.0
    %931 = vmatpush1.msra.mxu0 %v752
    %932 = vmatprep.subr.mxu0 0.0
    %933 = vmatpush1.msra.mxu0 %v751
    %934 = vmatprep.subr.mxu0 0.0
    %935 = vmatpush1.msra.mxu0 %v750
    %936 = vmatprep.subr.mxu0 0.0
    %937 = vmatpush1.msra.mxu0 %v749
    %938 = vmatprep.subr.mxu0 0.0
    %939 = vmatpush1.msra.mxu0 %v748
    %940 = vmatprep.subr.mxu0 0.0
    %941 = vmatpush1.msra.mxu0 %v747
    %942 = vmatprep.subr.mxu0 0.0
    %943 = vmatpush1.msra.mxu0 %v746
    %944 = vmatprep.subr.mxu0 0.0
    %945 = vmatpush1.msra.mxu0 %v745
    %946 = vmatprep.subr.mxu0 0.0
    %947 = vmatpush2.msra.mxu0 0.0
    %948 = vmatprep.subr.mxu0 0.0
    %949 = vmatpush2.msra.mxu0 0.0
    %950 = vmatprep.subr.mxu0 0.0
    %951 = vmatpush2.msra.mxu0 0.0
    %952 = vmatprep.subr.mxu0 0.0
    %953 = vmatpush2.msra.mxu0 0.0
    %954 = vmatprep.subr.mxu0 0.0
    %955 = vmatpush2.msra.mxu0 0.0
    %956 = vmatprep.subr.mxu0 0.0
    %957 = vmatpush2.msra.mxu0 0.0
    %958 = vmatprep.subr.mxu0 0.0
    %959 = vmatpush2.msra.mxu0 0.0
    %960 = vmatprep.subr.mxu0 0.0
    %961 = vmatpush2.msra.mxu0 0.0
    %962 = vmatprep.subr.mxu0 0.0
    %963 = vmatpush2.msra.mxu0 0.0
    %964 = vmatprep.subr.mxu0 0.0
    %965 = vmatpush2.msra.mxu0 0.0
    %966 = vmatprep.subr.mxu0 0.0
    %967 = vmatpush2.msra.mxu0 0.0
    %968 = vmatprep.subr.mxu0 0.0
    %969 = vmatpush2.msra.mxu0 0.0
    %970 = vmatprep.subr.mxu0 0.0
    %971 = vmatpush2.msra.mxu0 0.0
    %972 = vmatprep.subr.mxu0 0.0
    %973 = vmatpush2.msra.mxu0 0.0
    %974 = vmatprep.subr.mxu0 0.0
    %975 = vmatpush2.msra.mxu0 0.0
    %976 = vmatprep.subr.mxu0 0.0
    %977 = vmatpush2.msra.mxu0 0.0
    %978 = vmatprep.mubr.f32.mxu0 0.0
    %979 = vmatmul.mubr.f32.gmra.mxu0 %v909
    %v980 = vpop.f32.mrf.mxu0
    %v981 = vadd.f32 %v906, %v980
    %v982 = vpop.f32.mrf.mxu0
    %983 = vmatprep.mubr.f32.mxu0 0.0
    %984 = vmatmul.mubr.f32.gmra.mxu0 %v912
    %v985 = vpop.f32.mrf.mxu0
    %v986 = vadd.f32 %v906, %v985
    %v987 = vpop.f32.mrf.mxu0
    %988 = vdwg.mxu0
    %v989 = vmul.f32 %v981, 0.5
    %v990 = vmul.f32 %v986, 0.5
    %v991 = vmul.f32 %v981, 0.70710677
    %v992 = vmul.f32 %v986, 0.70710677
    %v993 = vand.u32 2147483647, %v991
    %v994 = vand.u32 2147483647, %v992
    %v995 = vmul.f32 %v993, 0.3275911
    %v996 = vmul.f32 %v994, 0.3275911
    %v997 = vadd.f32 %v995, 1.0
    %v998 = vadd.f32 %v996, 1.0
    %v999 = vrcp.pop %v997
    %v1000 = vmul.f32 1.0, %v999
    %v1001 = vrcp.pop %v998
    %v1002 = vmul.f32 1.0, %v1001
    %v1003 = vmul.f32 %v1000, 1.0614054
    %v1004 = vmul.f32 %v1002, 1.0614054
    %v1005 = vadd.f32 %v1003, -1.4531521
    %v1006 = vadd.f32 %v1004, -1.4531521
    %v1007 = vmul.f32 %v1005, %v1000
    %v1008 = vmul.f32 %v1006, %v1002
    %v1009 = vadd.f32 %v1007, 1.4214138
    %v1010 = vadd.f32 %v1008, 1.4214138
    %v1011 = vmul.f32 %v1009, %v1000
    %v1012 = vmul.f32 %v1010, %v1002
    %v1013 = vadd.f32 %v1011, -0.28449672
    %v1014 = vadd.f32 %v1012, -0.28449672
    %v1015 = vmul.f32 %v1013, %v1000
    %v1016 = vmul.f32 %v1014, %v1002
    %v1017 = vadd.f32 %v1015, 0.2548296
    %v1018 = vadd.f32 %v1016, 0.2548296
    %v1019 = vmul.f32 %v1017, %v1000
    %v1020 = vmul.f32 %v1018, %v1002
    %v1021 = vsub.f32 0.0, %v993
    %v1022 = vsub.f32 0.0, %v994
    %v1023 = vmul.f32 %v1021, %v993
    %v1024 = vmul.f32 %v1022, %v994
    %v1025 = vmul.f32 %v1023, 1.442695
    %v1026 = vpow.pop %v1025
    %v1027 = vmul.f32 %v1024, 1.442695
    %v1028 = vpow.pop %v1027
    %v1029 = vmul.f32 %v1019, %v1026
    %v1030 = vmul.f32 %v1020, %v1028
    %v1031 = vsub.f32 1.0, %v1029
    %v1032 = vsub.f32 1.0, %v1030
    %vm1033 = vcmp.ge.f32.partialorder %v991, 0.0
    %vm1034 = vcmp.ge.f32.partialorder %v992, 0.0
    %v1035 = vsub.f32 0.0, %v1031
    %v1036 = vsub.f32 0.0, %v1032
    %v1037 = vsel %vm1033, %v1031, %v1035
    %v1038 = vsel %vm1034, %v1032, %v1036
    %v1039 = vadd.f32 %v1037, 1.0
    %v1040 = vadd.f32 %v1038, 1.0
    %v1041 = vmul.f32 %v989, %v1039
    %v1042 = vmul.f32 %v990, %v1040
    %v1044 = vsel %vm907, %v1041, 0
    %v1047 = vsel %vm907, %v1042, 0
    %1049 = vmatprep.subr.mxu0 0.0
    %1050 = vmatpush1.msra.mxu0 0.0
    %1051 = vmatprep.subr.mxu0 0.0
    %1052 = vmatpush1.msra.mxu0 0.0
    %1053 = vmatprep.subr.mxu0 0.0
    %1054 = vmatpush1.msra.mxu0 0.0
    %1055 = vmatprep.subr.mxu0 0.0
    %1056 = vmatpush1.msra.mxu0 0.0
    %1057 = vmatprep.subr.mxu0 0.0
    %1058 = vmatpush1.msra.mxu0 0.0
    %1059 = vmatprep.subr.mxu0 0.0
    %1060 = vmatpush1.msra.mxu0 0.0
    %1061 = vmatprep.subr.mxu0 0.0
    %1062 = vmatpush1.msra.mxu0 0.0
    %1063 = vmatprep.subr.mxu0 0.0
    %1064 = vmatpush1.msra.mxu0 0.0
    %1065 = vmatprep.subr.mxu0 0.0
    %1066 = vmatpush1.msra.mxu0 %v760
    %1067 = vmatprep.subr.mxu0 0.0
    %1068 = vmatpush1.msra.mxu0 %v759
    %1069 = vmatprep.subr.mxu0 0.0
    %1070 = vmatpush1.msra.mxu0 %v758
    %1071 = vmatprep.subr.mxu0 0.0
    %1072 = vmatpush1.msra.mxu0 %v757
    %1073 = vmatprep.subr.mxu0 0.0
    %1074 = vmatpush1.msra.mxu0 %v756
    %1075 = vmatprep.subr.mxu0 0.0
    %1076 = vmatpush1.msra.mxu0 %v755
    %1077 = vmatprep.subr.mxu0 0.0
    %1078 = vmatpush1.msra.mxu0 %v754
    %1079 = vmatprep.subr.mxu0 0.0
    %1080 = vmatpush1.msra.mxu0 %v753
    %1081 = vmatprep.subr.mxu0 0.0
    %1082 = vmatpush2.msra.mxu0 0.0
    %1083 = vmatprep.subr.mxu0 0.0
    %1084 = vmatpush2.msra.mxu0 0.0
    %1085 = vmatprep.subr.mxu0 0.0
    %1086 = vmatpush2.msra.mxu0 0.0
    %1087 = vmatprep.subr.mxu0 0.0
    %1088 = vmatpush2.msra.mxu0 0.0
    %1089 = vmatprep.subr.mxu0 0.0
    %1090 = vmatpush2.msra.mxu0 0.0
    %1091 = vmatprep.subr.mxu0 0.0
    %1092 = vmatpush2.msra.mxu0 0.0
    %1093 = vmatprep.subr.mxu0 0.0
    %1094 = vmatpush2.msra.mxu0 0.0
    %1095 = vmatprep.subr.mxu0 0.0
    %1096 = vmatpush2.msra.mxu0 0.0
    %1097 = vmatprep.subr.mxu0 0.0
    %1098 = vmatpush2.msra.mxu0 0.0
    %1099 = vmatprep.subr.mxu0 0.0
    %1100 = vmatpush2.msra.mxu0 0.0
    %1101 = vmatprep.subr.mxu0 0.0
    %1102 = vmatpush2.msra.mxu0 0.0
    %1103 = vmatprep.subr.mxu0 0.0
    %1104 = vmatpush2.msra.mxu0 0.0
    %1105 = vmatprep.subr.mxu0 0.0
    %1106 = vmatpush2.msra.mxu0 0.0
    %1107 = vmatprep.subr.mxu0 0.0
    %1108 = vmatpush2.msra.mxu0 0.0
    %1109 = vmatprep.subr.mxu0 0.0
    %1110 = vmatpush2.msra.mxu0 0.0
    %1111 = vmatprep.subr.mxu0 0.0
    %1112 = vmatpush2.msra.mxu0 0.0
    %1113 = vmatprep.mubr.f32.mxu0 0.0
    %1114 = vmatmul.mubr.f32.gmra.mxu0 %v1044
    %v1115 = vpop.f32.mrf.mxu0
    %v1116 = vadd.f32 0.0, %v1115
    %v1117 = vpop.f32.mrf.mxu0
    %1118 = vmatprep.mubr.f32.mxu0 0.0
    %1119 = vmatmul.mubr.f32.gmra.mxu0 %v1047
    %v1120 = vpop.f32.mrf.mxu0
    %v1121 = vadd.f32 0.0, %v1120
    %v1122 = vpop.f32.mrf.mxu0
    %1123 = vdwg.mxu0
    %v1124 = vadd.f32 %v713, %v1116
    %v1125 = vadd.f32 %v714, %v1121
    %v1126 = vlaneseq
    %v1127 = vshrl.u32 %v1126, 7
    %v1128 = vsub.s32 0, %v1127
    %v1129 = vrot.slane %v763, %v1128
    %v1130 = vadd.f32 %v1124, %v1129
    %v1131 = vadd.f32 %v1125, %v1129
    %v1132 = vsel %vm134, %v1130, 0.0
    %1133 = vadd.xlane.f32.xlu0 %v1132
    %v1134 = vpop.xlane.xlu0 %1133
    %v1135 = vsel %vm134, %v1131, 0.0
    %1136 = vadd.xlane.f32.xlu0 %v1135
    %v1137 = vpop.xlane.xlu0 %1136
    %v1138 = vmul.f32 %v1134, %v141
    %v1139 = vmul.f32 %v1137, %v141
    %v1140 = vsub.f32 %v1130, %v1138
    %v1141 = vsub.f32 %v1131, %v1139
    %v1142 = vmul.f32 %v1140, %v1140
    %v1143 = vmul.f32 %v1141, %v1141
    %v1144 = vsel %vm134, %v1142, 0.0
    %1145 = vadd.xlane.f32.xlu0 %v1144
    %v1146 = vpop.xlane.xlu0 %1145
    %v1147 = vsel %vm134, %v1143, 0.0
    %1148 = vadd.xlane.f32.xlu0 %v1147
    %v1149 = vpop.xlane.xlu0 %1148
    %v1150 = vmul.f32 %v1146, %v141
    %v1151 = vmul.f32 %v1149, %v141
    %v1152 = vadd.f32 %v1150, 1e-05
    %v1153 = vadd.f32 %v1151, 1e-05
    %v1154 = vrsqrt.pop %v1152
    %v1155 = vrsqrt.pop %v1153
    %v1156 = vmul.f32 %v1140, %v1154
    %v1157 = vmul.f32 %v1141, %v1155
    %s1158 = scalar_lea.vmem %s2, 80
    %v1159 = vld [vmem:[%s1158] sm:$0xff]
    %v1160 = vld [vmem:[%s1158 + $0x8] sm:$0xff]
    %v1161 = vld [vmem:[%s1158 + $0x10] sm:$0xff]
    %v1162 = vld [vmem:[%s1158 + $0x18] sm:$0xff]
    %v1163 = vld [vmem:[%s1158 + $0x20] sm:$0xff]
    %v1164 = vld [vmem:[%s1158 + $0x28] sm:$0xff]
    %v1165 = vld [vmem:[%s1158 + $0x30] sm:$0xff]
    %v1166 = vld [vmem:[%s1158 + $0x38] sm:$0xff]
    %s1167 = scalar_lea.vmem %s1158, 64
    %v1168 = vld [vmem:[%s1167] ss:$8 sm:$0x3]
    %v1170 = vlaneseq
    %v1171 = vshrl.u32 %v1170, 7
    %v1172 = vsub.s32 0, %v1171
    %v1173 = vrot.slane %v1168, %v1172
    %v1174 = vlaneseq
    %v1175 = vshrl.u32 %v1174, 7
    %v1176 = vsub.s32 1, %v1175
    %v1177 = vrot.slane %v1168, %v1176
    %v1181 = vsel %vm134, %v1156, 0
    %v1184 = vsel %vm134, %v1157, 0
    %1186 = vmatprep.subr.mxu0 0.0
    %1187 = vmatpush1.msra.mxu0 0.0
    %1188 = vmatprep.subr.mxu0 0.0
    %1189 = vmatpush1.msra.mxu0 0.0
    %1190 = vmatprep.subr.mxu0 0.0
    %1191 = vmatpush1.msra.mxu0 0.0
    %1192 = vmatprep.subr.mxu0 0.0
    %1193 = vmatpush1.msra.mxu0 0.0
    %1194 = vmatprep.subr.mxu0 0.0
    %1195 = vmatpush1.msra.mxu0 0.0
    %1196 = vmatprep.subr.mxu0 0.0
    %1197 = vmatpush1.msra.mxu0 0.0
    %1198 = vmatprep.subr.mxu0 0.0
    %1199 = vmatpush1.msra.mxu0 0.0
    %1200 = vmatprep.subr.mxu0 0.0
    %1201 = vmatpush1.msra.mxu0 0.0
    %1202 = vmatprep.subr.mxu0 0.0
    %1203 = vmatpush1.msra.mxu0 0.0
    %1204 = vmatprep.subr.mxu0 0.0
    %1205 = vmatpush1.msra.mxu0 0.0
    %1206 = vmatprep.subr.mxu0 0.0
    %1207 = vmatpush1.msra.mxu0 0.0
    %1208 = vmatprep.subr.mxu0 0.0
    %1209 = vmatpush1.msra.mxu0 0.0
    %1210 = vmatprep.subr.mxu0 %v1166
    %1211 = vmatpush1.msra.mxu0 %v1165
    %1212 = vmatprep.subr.mxu0 %v1164
    %1213 = vmatpush1.msra.mxu0 %v1163
    %1214 = vmatprep.subr.mxu0 %v1162
    %1215 = vmatpush1.msra.mxu0 %v1161
    %1216 = vmatprep.subr.mxu0 %v1160
    %1217 = vmatpush1.msra.mxu0 %v1159
    %1218 = vmatprep.subr.mxu0 0.0
    %1219 = vmatpush2.msra.mxu0 0.0
    %1220 = vmatprep.subr.mxu0 0.0
    %1221 = vmatpush2.msra.mxu0 0.0
    %1222 = vmatprep.subr.mxu0 0.0
    %1223 = vmatpush2.msra.mxu0 0.0
    %1224 = vmatprep.subr.mxu0 0.0
    %1225 = vmatpush2.msra.mxu0 0.0
    %1226 = vmatprep.subr.mxu0 0.0
    %1227 = vmatpush2.msra.mxu0 0.0
    %1228 = vmatprep.subr.mxu0 0.0
    %1229 = vmatpush2.msra.mxu0 0.0
    %1230 = vmatprep.subr.mxu0 0.0
    %1231 = vmatpush2.msra.mxu0 0.0
    %1232 = vmatprep.subr.mxu0 0.0
    %1233 = vmatpush2.msra.mxu0 0.0
    %1234 = vmatprep.subr.mxu0 0.0
    %1235 = vmatpush2.msra.mxu0 0.0
    %1236 = vmatprep.subr.mxu0 0.0
    %1237 = vmatpush2.msra.mxu0 0.0
    %1238 = vmatprep.subr.mxu0 0.0
    %1239 = vmatpush2.msra.mxu0 0.0
    %1240 = vmatprep.subr.mxu0 0.0
    %1241 = vmatpush2.msra.mxu0 0.0
    %1242 = vmatprep.subr.mxu0 0.0
    %1243 = vmatpush2.msra.mxu0 0.0
    %1244 = vmatprep.subr.mxu0 0.0
    %1245 = vmatpush2.msra.mxu0 0.0
    %1246 = vmatprep.subr.mxu0 0.0
    %1247 = vmatpush2.msra.mxu0 0.0
    %1248 = vmatprep.subr.mxu0 0.0
    %1249 = vmatpush2.msra.mxu0 0.0
    %1250 = vmatprep.mubr.f32.mxu0 0.0
    %1251 = vmatmul.mubr.f32.gmra.mxu0 %v1181
    %v1252 = vpop.f32.mrf.mxu0
    %v1253 = vadd.f32 %v1173, %v1252
    %v1254 = vpop.f32.mrf.mxu0
    %v1255 = vadd.f32 %v1177, %v1254
    %1256 = vmatprep.mubr.f32.mxu0 0.0
    %1257 = vmatmul.mubr.f32.gmra.mxu0 %v1184
    %v1258 = vpop.f32.mrf.mxu0
    %v1259 = vadd.f32 %v1173, %v1258
    %v1260 = vpop.f32.mrf.mxu0
    %v1261 = vadd.f32 %v1177, %v1260
    %1262 = vdwg.mxu0
    %v1263 = vmul.f32 %v1253, %v130
    %v1264 = vmul.f32 %v1259, %v131
    %v1265 = vmul.f32 %v1253, %v271
    %v1266 = vmul.f32 %v1259, %v273
    %1269 = vrot.lane.b32.xlu0 %v1265, 96
    %v1270 = vpop.permute.xlu0 %1269
    %1271 = vrot.lane.b32.xlu0 %v1266, 96
    %v1272 = vpop.permute.xlu0 %1271
    %v1275 = vadd.f32 %v1263, %v1270
    %v1276 = vadd.f32 %v1264, %v1272
    %v1277 = vmul.f32 %v1253, %v291
    %v1278 = vmul.f32 %v1259, %v293
    %v1279 = vmul.f32 %v1253, %v299
    %v1280 = vmul.f32 %v1259, %v301
    %1283 = vrot.lane.b32.xlu0 %v1279, 96
    %v1284 = vpop.permute.xlu0 %1283
    %1285 = vrot.lane.b32.xlu0 %v1280, 96
    %v1286 = vpop.permute.xlu0 %1285
    %v1289 = vadd.f32 %v1277, %v1284
    %v1290 = vadd.f32 %v1278, %v1286
    %1293 = vrot.lane.b32.xlu0 %v1289, 64
    %v1294 = vpop.permute.xlu0 %1293
    %1295 = vrot.lane.b32.xlu0 %v1290, 64
    %v1296 = vpop.permute.xlu0 %1295
    %v1298 = vsel %vm322, %v1275, 0
    %v1301 = vsel %vm322, %v1276, 0
    %v1303 = vsel %vm322, %v1294, 0
    %v1305 = vsel %vm322, %v1296, 0
    %1307 = vmatprep.subr.mxu0 0.0
    %1308 = vmatpush1.xpose.msra.mxu0 0.0
    %1309 = vmatprep.subr.mxu0 0.0
    %1310 = vmatpush1.xpose.msra.mxu0 0.0
    %1311 = vmatprep.subr.mxu0 0.0
    %1312 = vmatpush1.xpose.msra.mxu0 0.0
    %1313 = vmatprep.subr.mxu0 0.0
    %1314 = vmatpush1.xpose.msra.mxu0 0.0
    %1315 = vmatprep.subr.mxu0 0.0
    %1316 = vmatpush1.xpose.msra.mxu0 0.0
    %1317 = vmatprep.subr.mxu0 0.0
    %1318 = vmatpush1.xpose.msra.mxu0 0.0
    %1319 = vmatprep.subr.mxu0 0.0
    %1320 = vmatpush1.xpose.msra.mxu0 0.0
    %1321 = vmatprep.subr.mxu0 0.0
    %1322 = vmatpush1.xpose.msra.mxu0 0.0
    %1323 = vmatprep.subr.mxu0 0.0
    %1324 = vmatpush1.xpose.msra.mxu0 0.0
    %1325 = vmatprep.subr.mxu0 0.0
    %1326 = vmatpush1.xpose.msra.mxu0 0.0
    %1327 = vmatprep.subr.mxu0 0.0
    %1328 = vmatpush1.xpose.msra.mxu0 0.0
    %1329 = vmatprep.subr.mxu0 0.0
    %1330 = vmatpush1.xpose.msra.mxu0 0.0
    %1331 = vmatprep.subr.mxu0 0.0
    %1332 = vmatpush1.xpose.msra.mxu0 0.0
    %1333 = vmatprep.subr.mxu0 0.0
    %1334 = vmatpush1.xpose.msra.mxu0 0.0
    %1335 = vmatprep.subr.mxu0 0.0
    %1336 = vmatpush1.xpose.msra.mxu0 %v1305
    %1337 = vmatprep.subr.mxu0 0.0
    %1338 = vmatpush1.xpose.msra.mxu0 %v1303
    %1339 = vmatprep.subr.mxu0 0.0
    %1340 = vmatpush2.xpose.msra.mxu0 0.0
    %1341 = vmatprep.subr.mxu0 0.0
    %1342 = vmatpush2.xpose.msra.mxu0 0.0
    %1343 = vmatprep.subr.mxu0 0.0
    %1344 = vmatpush2.xpose.msra.mxu0 0.0
    %1345 = vmatprep.subr.mxu0 0.0
    %1346 = vmatpush2.xpose.msra.mxu0 0.0
    %1347 = vmatprep.subr.mxu0 0.0
    %1348 = vmatpush2.xpose.msra.mxu0 0.0
    %1349 = vmatprep.subr.mxu0 0.0
    %1350 = vmatpush2.xpose.msra.mxu0 0.0
    %1351 = vmatprep.subr.mxu0 0.0
    %1352 = vmatpush2.xpose.msra.mxu0 0.0
    %1353 = vmatprep.subr.mxu0 0.0
    %1354 = vmatpush2.xpose.msra.mxu0 0.0
    %1355 = vmatprep.subr.mxu0 0.0
    %1356 = vmatpush2.xpose.msra.mxu0 0.0
    %1357 = vmatprep.subr.mxu0 0.0
    %1358 = vmatpush2.xpose.msra.mxu0 0.0
    %1359 = vmatprep.subr.mxu0 0.0
    %1360 = vmatpush2.xpose.msra.mxu0 0.0
    %1361 = vmatprep.subr.mxu0 0.0
    %1362 = vmatpush2.xpose.msra.mxu0 0.0
    %1363 = vmatprep.subr.mxu0 0.0
    %1364 = vmatpush2.xpose.msra.mxu0 0.0
    %1365 = vmatprep.subr.mxu0 0.0
    %1366 = vmatpush2.xpose.msra.mxu0 0.0
    %1367 = vmatprep.subr.mxu0 0.0
    %1368 = vmatpush2.xpose.msra.mxu0 0.0
    %1369 = vmatprep.subr.mxu0 0.0
    %1370 = vmatpush2.xpose.msra.mxu0 0.0
    %1371 = vmatprep.mubr.f32.mxu0 0.0
    %1372 = vmatmul.mubr.f32.gmra.mxu0 %v1298
    %v1373 = vpop.f32.mrf.mxu0
    %v1374 = vadd.f32 %v128, %v1373
    %v1375 = vpop.f32.mrf.mxu0
    %1376 = vmatprep.mubr.f32.mxu0 0.0
    %1377 = vmatmul.mubr.f32.gmra.mxu0 %v1301
    %v1378 = vpop.f32.mrf.mxu0
    %v1379 = vadd.f32 %v129, %v1378
    %v1380 = vpop.f32.mrf.mxu0
    %1381 = vdwg.mxu0
    %v1382 = vsel %vm322, %v1374, -inf
    %1383 = vmax.xlane.f32.xlu0 %v1382
    %v1384 = vpop.xlane.xlu0 %1383
    %v1385 = vsel %vm322, %v1379, -inf
    %1386 = vmax.xlane.f32.xlu0 %v1385
    %v1387 = vpop.xlane.xlu0 %1386
    %v1388 = vsub.f32 %v1374, %v1384
    %v1389 = vsub.f32 %v1379, %v1387
    %v1390 = vmul.f32 %v1388, 1.442695
    %v1391 = vpow.pop %v1390
    %v1392 = vmul.f32 %v1389, 1.442695
    %v1393 = vpow.pop %v1392
    %v1394 = vsel %vm322, %v1391, 0.0
    %1395 = vadd.xlane.f32.xlu0 %v1394
    %v1396 = vpop.xlane.xlu0 %1395
    %v1397 = vsel %vm322, %v1393, 0.0
    %1398 = vadd.xlane.f32.xlu0 %v1397
    %v1399 = vpop.xlane.xlu0 %1398
    %v1400 = vrcp.pop %v1396
    %v1401 = vrcp.pop %v1399
    %v1402 = vmul.f32 %v1391, %v1400
    %v1403 = vmul.f32 %v1393, %v1401
    %1404 = vrot.lane.b32.xlu0 %v1275, 112
    %v1405 = vpop.permute.xlu0 %1404
    %1406 = vrot.lane.b32.xlu0 %v1276, 112
    %v1407 = vpop.permute.xlu0 %1406
    %1408 = vrot.lane.b32.xlu0 %v1289, 48
    %v1409 = vpop.permute.xlu0 %1408
    %1410 = vrot.lane.b32.xlu0 %v1290, 48
    %v1411 = vpop.permute.xlu0 %1410
    %v1412 = vsel %vm322, %v1405, 0
    %v1414 = vsel %vm322, %v1407, 0
    %v1416 = vsel %vm322, %v1409, 0
    %v1418 = vsel %vm322, %v1411, 0
    %1420 = vmatprep.subr.mxu0 0.0
    %1421 = vmatpush1.xpose.msra.mxu0 0.0
    %1422 = vmatprep.subr.mxu0 0.0
    %1423 = vmatpush1.xpose.msra.mxu0 0.0
    %1424 = vmatprep.subr.mxu0 0.0
    %1425 = vmatpush1.xpose.msra.mxu0 0.0
    %1426 = vmatprep.subr.mxu0 0.0
    %1427 = vmatpush1.xpose.msra.mxu0 0.0
    %1428 = vmatprep.subr.mxu0 0.0
    %1429 = vmatpush1.xpose.msra.mxu0 0.0
    %1430 = vmatprep.subr.mxu0 0.0
    %1431 = vmatpush1.xpose.msra.mxu0 0.0
    %1432 = vmatprep.subr.mxu0 0.0
    %1433 = vmatpush1.xpose.msra.mxu0 0.0
    %1434 = vmatprep.subr.mxu0 0.0
    %1435 = vmatpush1.xpose.msra.mxu0 0.0
    %1436 = vmatprep.subr.mxu0 0.0
    %1437 = vmatpush1.xpose.msra.mxu0 0.0
    %1438 = vmatprep.subr.mxu0 0.0
    %1439 = vmatpush1.xpose.msra.mxu0 0.0
    %1440 = vmatprep.subr.mxu0 0.0
    %1441 = vmatpush1.xpose.msra.mxu0 0.0
    %1442 = vmatprep.subr.mxu0 0.0
    %1443 = vmatpush1.xpose.msra.mxu0 0.0
    %1444 = vmatprep.subr.mxu0 0.0
    %1445 = vmatpush1.xpose.msra.mxu0 0.0
    %1446 = vmatprep.subr.mxu0 0.0
    %1447 = vmatpush1.xpose.msra.mxu0 0.0
    %1448 = vmatprep.subr.mxu0 0.0
    %1449 = vmatpush1.xpose.msra.mxu0 %v1418
    %1450 = vmatprep.subr.mxu0 0.0
    %1451 = vmatpush1.xpose.msra.mxu0 %v1416
    %1452 = vmatprep.subr.mxu0 0.0
    %1453 = vmatpush2.xpose.msra.mxu0 0.0
    %1454 = vmatprep.subr.mxu0 0.0
    %1455 = vmatpush2.xpose.msra.mxu0 0.0
    %1456 = vmatprep.subr.mxu0 0.0
    %1457 = vmatpush2.xpose.msra.mxu0 0.0
    %1458 = vmatprep.subr.mxu0 0.0
    %1459 = vmatpush2.xpose.msra.mxu0 0.0
    %1460 = vmatprep.subr.mxu0 0.0
    %1461 = vmatpush2.xpose.msra.mxu0 0.0
    %1462 = vmatprep.subr.mxu0 0.0
    %1463 = vmatpush2.xpose.msra.mxu0 0.0
    %1464 = vmatprep.subr.mxu0 0.0
    %1465 = vmatpush2.xpose.msra.mxu0 0.0
    %1466 = vmatprep.subr.mxu0 0.0
    %1467 = vmatpush2.xpose.msra.mxu0 0.0
    %1468 = vmatprep.subr.mxu0 0.0
    %1469 = vmatpush2.xpose.msra.mxu0 0.0
    %1470 = vmatprep.subr.mxu0 0.0
    %1471 = vmatpush2.xpose.msra.mxu0 0.0
    %1472 = vmatprep.subr.mxu0 0.0
    %1473 = vmatpush2.xpose.msra.mxu0 0.0
    %1474 = vmatprep.subr.mxu0 0.0
    %1475 = vmatpush2.xpose.msra.mxu0 0.0
    %1476 = vmatprep.subr.mxu0 0.0
    %1477 = vmatpush2.xpose.msra.mxu0 0.0
    %1478 = vmatprep.subr.mxu0 0.0
    %1479 = vmatpush2.xpose.msra.mxu0 0.0
    %1480 = vmatprep.subr.mxu0 0.0
    %1481 = vmatpush2.xpose.msra.mxu0 0.0
    %1482 = vmatprep.subr.mxu0 0.0
    %1483 = vmatpush2.xpose.msra.mxu0 0.0
    %1484 = vmatprep.mubr.f32.mxu0 0.0
    %1485 = vmatmul.mubr.f32.gmra.mxu0 %v1412
    %v1486 = vpop.f32.mrf.mxu0
    %v1487 = vadd.f32 %v128, %v1486
    %v1488 = vpop.f32.mrf.mxu0
    %1489 = vmatprep.mubr.f32.mxu0 0.0
    %1490 = vmatmul.mubr.f32.gmra.mxu0 %v1414
    %v1491 = vpop.f32.mrf.mxu0
    %v1492 = vadd.f32 %v129, %v1491
    %v1493 = vpop.f32.mrf.mxu0
    %1494 = vdwg.mxu0
    %v1495 = vsel %vm322, %v1487, -inf
    %1496 = vmax.xlane.f32.xlu0 %v1495
    %v1497 = vpop.xlane.xlu0 %1496
    %v1498 = vsel %vm322, %v1492, -inf
    %1499 = vmax.xlane.f32.xlu0 %v1498
    %v1500 = vpop.xlane.xlu0 %1499
    %v1501 = vsub.f32 %v1487, %v1497
    %v1502 = vsub.f32 %v1492, %v1500
    %v1503 = vmul.f32 %v1501, 1.442695
    %v1504 = vpow.pop %v1503
    %v1505 = vmul.f32 %v1502, 1.442695
    %v1506 = vpow.pop %v1505
    %v1507 = vsel %vm322, %v1504, 0.0
    %1508 = vadd.xlane.f32.xlu0 %v1507
    %v1509 = vpop.xlane.xlu0 %1508
    %v1510 = vsel %vm322, %v1506, 0.0
    %1511 = vadd.xlane.f32.xlu0 %v1510
    %v1512 = vpop.xlane.xlu0 %1511
    %v1513 = vrcp.pop %v1509
    %v1514 = vrcp.pop %v1512
    %v1515 = vmul.f32 %v1504, %v1513
    %v1516 = vmul.f32 %v1506, %v1514
    %1519 = vrot.lane.b32.xlu0 %v1255, 96
    %v1520 = vpop.permute.xlu0 %1519
    %1521 = vrot.lane.b32.xlu0 %v1261, 96
    %v1522 = vpop.permute.xlu0 %1521
    %v1526 = vsel %vm322, %v1515, 0
    %v1529 = vsel %vm322, %v1516, 0
    %1531 = vmatprep.subr.mxu0 0.0
    %1532 = vmatpush1.msra.mxu0 0.0
    %1533 = vmatprep.subr.mxu0 0.0
    %1534 = vmatpush1.msra.mxu0 0.0
    %1535 = vmatprep.subr.mxu0 0.0
    %1536 = vmatpush1.msra.mxu0 0.0
    %1537 = vmatprep.subr.mxu0 0.0
    %1538 = vmatpush1.msra.mxu0 0.0
    %1539 = vmatprep.subr.mxu0 0.0
    %1540 = vmatpush1.msra.mxu0 0.0
    %1541 = vmatprep.subr.mxu0 0.0
    %1542 = vmatpush1.msra.mxu0 0.0
    %1543 = vmatprep.subr.mxu0 0.0
    %1544 = vmatpush1.msra.mxu0 0.0
    %1545 = vmatprep.subr.mxu0 0.0
    %1546 = vmatpush1.msra.mxu0 0.0
    %1547 = vmatprep.subr.mxu0 0.0
    %1548 = vmatpush1.msra.mxu0 0.0
    %1549 = vmatprep.subr.mxu0 0.0
    %1550 = vmatpush1.msra.mxu0 0.0
    %1551 = vmatprep.subr.mxu0 0.0
    %1552 = vmatpush1.msra.mxu0 0.0
    %1553 = vmatprep.subr.mxu0 0.0
    %1554 = vmatpush1.msra.mxu0 0.0
    %1555 = vmatprep.subr.mxu0 0.0
    %1556 = vmatpush1.msra.mxu0 0.0
    %1557 = vmatprep.subr.mxu0 0.0
    %1558 = vmatpush1.msra.mxu0 0.0
    %1559 = vmatprep.subr.mxu0 0.0
    %1560 = vmatpush1.msra.mxu0 %v1522
    %1561 = vmatprep.subr.mxu0 0.0
    %1562 = vmatpush1.msra.mxu0 %v1520
    %1563 = vmatprep.subr.mxu0 0.0
    %1564 = vmatpush2.msra.mxu0 0.0
    %1565 = vmatprep.subr.mxu0 0.0
    %1566 = vmatpush2.msra.mxu0 0.0
    %1567 = vmatprep.subr.mxu0 0.0
    %1568 = vmatpush2.msra.mxu0 0.0
    %1569 = vmatprep.subr.mxu0 0.0
    %1570 = vmatpush2.msra.mxu0 0.0
    %1571 = vmatprep.subr.mxu0 0.0
    %1572 = vmatpush2.msra.mxu0 0.0
    %1573 = vmatprep.subr.mxu0 0.0
    %1574 = vmatpush2.msra.mxu0 0.0
    %1575 = vmatprep.subr.mxu0 0.0
    %1576 = vmatpush2.msra.mxu0 0.0
    %1577 = vmatprep.subr.mxu0 0.0
    %1578 = vmatpush2.msra.mxu0 0.0
    %1579 = vmatprep.subr.mxu0 0.0
    %1580 = vmatpush2.msra.mxu0 0.0
    %1581 = vmatprep.subr.mxu0 0.0
    %1582 = vmatpush2.msra.mxu0 0.0
    %1583 = vmatprep.subr.mxu0 0.0
    %1584 = vmatpush2.msra.mxu0 0.0
    %1585 = vmatprep.subr.mxu0 0.0
    %1586 = vmatpush2.msra.mxu0 0.0
    %1587 = vmatprep.subr.mxu0 0.0
    %1588 = vmatpush2.msra.mxu0 0.0
    %1589 = vmatprep.subr.mxu0 0.0
    %1590 = vmatpush2.msra.mxu0 0.0
    %1591 = vmatprep.subr.mxu0 0.0
    %1592 = vmatpush2.msra.mxu0 0.0
    %1593 = vmatprep.subr.mxu0 0.0
    %1594 = vmatpush2.msra.mxu0 0.0
    %1595 = vmatprep.mubr.f32.mxu0 0.0
    %1596 = vmatmul.mubr.f32.gmra.mxu0 %v1526
    %v1597 = vpop.f32.mrf.mxu0
    %v1598 = vadd.f32 0.0, %v1597
    %v1599 = vpop.f32.mrf.mxu0
    %1600 = vmatprep.mubr.f32.mxu0 0.0
    %1601 = vmatmul.mubr.f32.gmra.mxu0 %v1529
    %v1602 = vpop.f32.mrf.mxu0
    %v1603 = vadd.f32 0.0, %v1602
    %v1604 = vpop.f32.mrf.mxu0
    %1605 = vdwg.mxu0
    %v1607 = vsel %vm322, %v1402, 0
    %v1610 = vsel %vm322, %v1403, 0
    %1612 = vmatprep.subr.mxu0 0.0
    %1613 = vmatpush1.msra.mxu0 0.0
    %1614 = vmatprep.subr.mxu0 0.0
    %1615 = vmatpush1.msra.mxu0 0.0
    %1616 = vmatprep.subr.mxu0 0.0
    %1617 = vmatpush1.msra.mxu0 0.0
    %1618 = vmatprep.subr.mxu0 0.0
    %1619 = vmatpush1.msra.mxu0 0.0
    %1620 = vmatprep.subr.mxu0 0.0
    %1621 = vmatpush1.msra.mxu0 0.0
    %1622 = vmatprep.subr.mxu0 0.0
    %1623 = vmatpush1.msra.mxu0 0.0
    %1624 = vmatprep.subr.mxu0 0.0
    %1625 = vmatpush1.msra.mxu0 0.0
    %1626 = vmatprep.subr.mxu0 0.0
    %1627 = vmatpush1.msra.mxu0 0.0
    %1628 = vmatprep.subr.mxu0 0.0
    %1629 = vmatpush1.msra.mxu0 0.0
    %1630 = vmatprep.subr.mxu0 0.0
    %1631 = vmatpush1.msra.mxu0 0.0
    %1632 = vmatprep.subr.mxu0 0.0
    %1633 = vmatpush1.msra.mxu0 0.0
    %1634 = vmatprep.subr.mxu0 0.0
    %1635 = vmatpush1.msra.mxu0 0.0
    %1636 = vmatprep.subr.mxu0 0.0
    %1637 = vmatpush1.msra.mxu0 0.0
    %1638 = vmatprep.subr.mxu0 0.0
    %1639 = vmatpush1.msra.mxu0 0.0
    %1640 = vmatprep.subr.mxu0 0.0
    %1641 = vmatpush1.msra.mxu0 %v1261
    %1642 = vmatprep.subr.mxu0 0.0
    %1643 = vmatpush1.msra.mxu0 %v1255
    %1644 = vmatprep.subr.mxu0 0.0
    %1645 = vmatpush2.msra.mxu0 0.0
    %1646 = vmatprep.subr.mxu0 0.0
    %1647 = vmatpush2.msra.mxu0 0.0
    %1648 = vmatprep.subr.mxu0 0.0
    %1649 = vmatpush2.msra.mxu0 0.0
    %1650 = vmatprep.subr.mxu0 0.0
    %1651 = vmatpush2.msra.mxu0 0.0
    %1652 = vmatprep.subr.mxu0 0.0
    %1653 = vmatpush2.msra.mxu0 0.0
    %1654 = vmatprep.subr.mxu0 0.0
    %1655 = vmatpush2.msra.mxu0 0.0
    %1656 = vmatprep.subr.mxu0 0.0
    %1657 = vmatpush2.msra.mxu0 0.0
    %1658 = vmatprep.subr.mxu0 0.0
    %1659 = vmatpush2.msra.mxu0 0.0
    %1660 = vmatprep.subr.mxu0 0.0
    %1661 = vmatpush2.msra.mxu0 0.0
    %1662 = vmatprep.subr.mxu0 0.0
    %1663 = vmatpush2.msra.mxu0 0.0
    %1664 = vmatprep.subr.mxu0 0.0
    %1665 = vmatpush2.msra.mxu0 0.0
    %1666 = vmatprep.subr.mxu0 0.0
    %1667 = vmatpush2.msra.mxu0 0.0
    %1668 = vmatprep.subr.mxu0 0.0
    %1669 = vmatpush2.msra.mxu0 0.0
    %1670 = vmatprep.subr.mxu0 0.0
    %1671 = vmatpush2.msra.mxu0 0.0
    %1672 = vmatprep.subr.mxu0 0.0
    %1673 = vmatpush2.msra.mxu0 0.0
    %1674 = vmatprep.subr.mxu0 0.0
    %1675 = vmatpush2.msra.mxu0 0.0
    %1676 = vmatprep.mubr.f32.mxu0 0.0
    %1677 = vmatmul.mubr.f32.gmra.mxu0 %v1607
    %v1678 = vpop.f32.mrf.mxu0
    %v1679 = vadd.f32 %v1598, %v1678
    %v1680 = vpop.f32.mrf.mxu0
    %1681 = vmatprep.mubr.f32.mxu0 0.0
    %1682 = vmatmul.mubr.f32.gmra.mxu0 %v1610
    %v1683 = vpop.f32.mrf.mxu0
    %v1684 = vadd.f32 %v1603, %v1683
    %v1685 = vpop.f32.mrf.mxu0
    %1686 = vdwg.mxu0
    %v1687 = vadd.f32 %v1130, %v1679
    %v1688 = vadd.f32 %v1131, %v1684
    %v1689 = vsel %vm134, %v1687, 0.0
    %1690 = vadd.xlane.f32.xlu0 %v1689
    %v1691 = vpop.xlane.xlu0 %1690
    %v1692 = vsel %vm134, %v1688, 0.0
    %1693 = vadd.xlane.f32.xlu0 %v1692
    %v1694 = vpop.xlane.xlu0 %1693
    %v1695 = vmul.f32 %v1691, %v141
    %v1696 = vmul.f32 %v1694, %v141
    %v1697 = vsub.f32 %v1687, %v1695
    %v1698 = vsub.f32 %v1688, %v1696
    %v1699 = vmul.f32 %v1697, %v1697
    %v1700 = vmul.f32 %v1698, %v1698
    %v1701 = vsel %vm134, %v1699, 0.0
    %1702 = vadd.xlane.f32.xlu0 %v1701
    %v1703 = vpop.xlane.xlu0 %1702
    %v1704 = vsel %vm134, %v1700, 0.0
    %1705 = vadd.xlane.f32.xlu0 %v1704
    %v1706 = vpop.xlane.xlu0 %1705
    %v1707 = vmul.f32 %v1703, %v141
    %v1708 = vmul.f32 %v1706, %v141
    %v1709 = vadd.f32 %v1707, 1e-05
    %v1710 = vadd.f32 %v1708, 1e-05
    %v1711 = vrsqrt.pop %v1709
    %v1712 = vrsqrt.pop %v1710
    %v1713 = vmul.f32 %v1697, %v1711
    %v1714 = vmul.f32 %v1698, %v1712
    %s1715 = scalar_lea.vmem %s3, 184
    %v1716 = vld [vmem:[%s1715] sm:$0xff]
    %v1717 = vld [vmem:[%s1715 + $0x8] sm:$0xff]
    %v1718 = vld [vmem:[%s1715 + $0x10] sm:$0xff]
    %v1719 = vld [vmem:[%s1715 + $0x18] sm:$0xff]
    %v1720 = vld [vmem:[%s1715 + $0x20] sm:$0xff]
    %v1721 = vld [vmem:[%s1715 + $0x28] sm:$0xff]
    %v1722 = vld [vmem:[%s1715 + $0x30] sm:$0xff]
    %v1723 = vld [vmem:[%s1715 + $0x38] sm:$0xff]
    %v1724 = vld [vmem:[%s1715 + $0x40] sm:$0xff]
    %v1725 = vld [vmem:[%s1715 + $0x48] sm:$0xff]
    %v1726 = vld [vmem:[%s1715 + $0x50] sm:$0xff]
    %v1727 = vld [vmem:[%s1715 + $0x58] sm:$0xff]
    %v1728 = vld [vmem:[%s1715 + $0x60] sm:$0xff]
    %v1729 = vld [vmem:[%s1715 + $0x68] sm:$0xff]
    %v1730 = vld [vmem:[%s1715 + $0x70] sm:$0xff]
    %v1731 = vld [vmem:[%s1715 + $0x78] sm:$0xff]
    %v1732 = vld [vmem:[%s1715 + $0x80] sm:$0xff]
    %v1733 = vld [vmem:[%s1715 + $0x88] sm:$0xff]
    %v1734 = vld [vmem:[%s1715 + $0x90] sm:$0xff]
    %v1735 = vld [vmem:[%s1715 + $0x98] sm:$0xff]
    %v1736 = vld [vmem:[%s1715 + $0xa0] sm:$0x1]
    %v1737 = vld [vmem:[%s1715 + $0xa8] sm:$0x1]
    %v1738 = vld [vmem:[%s1715 + $0xb0] sm:$0x1]
    %v1739 = vlaneseq
    %v1740 = vshrl.u32 %v1739, 7
    %v1741 = vsub.s32 0, %v1740
    %v1742 = vrot.slane %v1736, %v1741
    %v1744 = vsel %vm134, %v1713, 0
    %v1747 = vsel %vm134, %v1714, 0
    %1749 = vmatprep.subr.mxu0 0.0
    %1750 = vmatpush1.msra.mxu0 0.0
    %1751 = vmatprep.subr.mxu0 0.0
    %1752 = vmatpush1.msra.mxu0 0.0
    %1753 = vmatprep.subr.mxu0 0.0
    %1754 = vmatpush1.msra.mxu0 0.0
    %1755 = vmatprep.subr.mxu0 0.0
    %1756 = vmatpush1.msra.mxu0 0.0
    %1757 = vmatprep.subr.mxu0 0.0
    %1758 = vmatpush1.msra.mxu0 0.0
    %1759 = vmatprep.subr.mxu0 0.0
    %1760 = vmatpush1.msra.mxu0 0.0
    %1761 = vmatprep.subr.mxu0 0.0
    %1762 = vmatpush1.msra.mxu0 0.0
    %1763 = vmatprep.subr.mxu0 0.0
    %1764 = vmatpush1.msra.mxu0 0.0
    %1765 = vmatprep.subr.mxu0 0.0
    %1766 = vmatpush1.msra.mxu0 0.0
    %1767 = vmatprep.subr.mxu0 0.0
    %1768 = vmatpush1.msra.mxu0 0.0
    %1769 = vmatprep.subr.mxu0 0.0
    %1770 = vmatpush1.msra.mxu0 0.0
    %1771 = vmatprep.subr.mxu0 0.0
    %1772 = vmatpush1.msra.mxu0 0.0
    %1773 = vmatprep.subr.mxu0 0.0
    %1774 = vmatpush1.msra.mxu0 %v1719
    %1775 = vmatprep.subr.mxu0 0.0
    %1776 = vmatpush1.msra.mxu0 %v1718
    %1777 = vmatprep.subr.mxu0 0.0
    %1778 = vmatpush1.msra.mxu0 %v1717
    %1779 = vmatprep.subr.mxu0 0.0
    %1780 = vmatpush1.msra.mxu0 %v1716
    %1781 = vmatprep.subr.mxu0 0.0
    %1782 = vmatpush2.msra.mxu0 0.0
    %1783 = vmatprep.subr.mxu0 0.0
    %1784 = vmatpush2.msra.mxu0 0.0
    %1785 = vmatprep.subr.mxu0 0.0
    %1786 = vmatpush2.msra.mxu0 0.0
    %1787 = vmatprep.subr.mxu0 0.0
    %1788 = vmatpush2.msra.mxu0 0.0
    %1789 = vmatprep.subr.mxu0 0.0
    %1790 = vmatpush2.msra.mxu0 0.0
    %1791 = vmatprep.subr.mxu0 0.0
    %1792 = vmatpush2.msra.mxu0 0.0
    %1793 = vmatprep.subr.mxu0 0.0
    %1794 = vmatpush2.msra.mxu0 0.0
    %1795 = vmatprep.subr.mxu0 0.0
    %1796 = vmatpush2.msra.mxu0 0.0
    %1797 = vmatprep.subr.mxu0 0.0
    %1798 = vmatpush2.msra.mxu0 0.0
    %1799 = vmatprep.subr.mxu0 0.0
    %1800 = vmatpush2.msra.mxu0 0.0
    %1801 = vmatprep.subr.mxu0 0.0
    %1802 = vmatpush2.msra.mxu0 0.0
    %1803 = vmatprep.subr.mxu0 0.0
    %1804 = vmatpush2.msra.mxu0 0.0
    %1805 = vmatprep.subr.mxu0 0.0
    %1806 = vmatpush2.msra.mxu0 0.0
    %1807 = vmatprep.subr.mxu0 0.0
    %1808 = vmatpush2.msra.mxu0 0.0
    %1809 = vmatprep.subr.mxu0 0.0
    %1810 = vmatpush2.msra.mxu0 0.0
    %1811 = vmatprep.subr.mxu0 0.0
    %1812 = vmatpush2.msra.mxu0 0.0
    %1813 = vmatprep.mubr.f32.mxu0 0.0
    %1814 = vmatmul.mubr.f32.gmra.mxu0 %v1744
    %v1815 = vpop.f32.mrf.mxu0
    %v1816 = vadd.f32 %v1742, %v1815
    %v1817 = vpop.f32.mrf.mxu0
    %1818 = vmatprep.mubr.f32.mxu0 0.0
    %1819 = vmatmul.mubr.f32.gmra.mxu0 %v1747
    %v1820 = vpop.f32.mrf.mxu0
    %v1821 = vadd.f32 %v1742, %v1820
    %v1822 = vpop.f32.mrf.mxu0
    %1823 = vdwg.mxu0
    %v1824 = vmul.f32 %v1816, 0.5
    %v1825 = vmul.f32 %v1821, 0.5
    %v1826 = vmul.f32 %v1816, 0.70710677
    %v1827 = vmul.f32 %v1821, 0.70710677
    %v1828 = vand.u32 2147483647, %v1826
    %v1829 = vand.u32 2147483647, %v1827
    %v1830 = vmul.f32 %v1828, 0.3275911
    %v1831 = vmul.f32 %v1829, 0.3275911
    %v1832 = vadd.f32 %v1830, 1.0
    %v1833 = vadd.f32 %v1831, 1.0
    %v1834 = vrcp.pop %v1832
    %v1835 = vmul.f32 1.0, %v1834
    %v1836 = vrcp.pop %v1833
    %v1837 = vmul.f32 1.0, %v1836
    %v1838 = vmul.f32 %v1835, 1.0614054
    %v1839 = vmul.f32 %v1837, 1.0614054
    %v1840 = vadd.f32 %v1838, -1.4531521
    %v1841 = vadd.f32 %v1839, -1.4531521
    %v1842 = vmul.f32 %v1840, %v1835
    %v1843 = vmul.f32 %v1841, %v1837
    %v1844 = vadd.f32 %v1842, 1.4214138
    %v1845 = vadd.f32 %v1843, 1.4214138
    %v1846 = vmul.f32 %v1844, %v1835
    %v1847 = vmul.f32 %v1845, %v1837
    %v1848 = vadd.f32 %v1846, -0.28449672
    %v1849 = vadd.f32 %v1847, -0.28449672
    %v1850 = vmul.f32 %v1848, %v1835
    %v1851 = vmul.f32 %v1849, %v1837
    %v1852 = vadd.f32 %v1850, 0.2548296
    %v1853 = vadd.f32 %v1851, 0.2548296
    %v1854 = vmul.f32 %v1852, %v1835
    %v1855 = vmul.f32 %v1853, %v1837
    %v1856 = vsub.f32 0.0, %v1828
    %v1857 = vsub.f32 0.0, %v1829
    %v1858 = vmul.f32 %v1856, %v1828
    %v1859 = vmul.f32 %v1857, %v1829
    %v1860 = vmul.f32 %v1858, 1.442695
    %v1861 = vpow.pop %v1860
    %v1862 = vmul.f32 %v1859, 1.442695
    %v1863 = vpow.pop %v1862
    %v1864 = vmul.f32 %v1854, %v1861
    %v1865 = vmul.f32 %v1855, %v1863
    %v1866 = vsub.f32 1.0, %v1864
    %v1867 = vsub.f32 1.0, %v1865
    %vm1868 = vcmp.ge.f32.partialorder %v1826, 0.0
    %vm1869 = vcmp.ge.f32.partialorder %v1827, 0.0
    %v1870 = vsub.f32 0.0, %v1866
    %v1871 = vsub.f32 0.0, %v1867
    %v1872 = vsel %vm1868, %v1866, %v1870
    %v1873 = vsel %vm1869, %v1867, %v1871
    %v1874 = vadd.f32 %v1872, 1.0
    %v1875 = vadd.f32 %v1873, 1.0
    %v1876 = vmul.f32 %v1824, %v1874
    %v1877 = vmul.f32 %v1825, %v1875
    %v1878 = vlaneseq
    %v1879 = vshrl.u32 %v1878, 7
    %v1880 = vsub.s32 0, %v1879
    %v1881 = vrot.slane %v1737, %v1880
    %v1883 = vsel %vm907, %v1876, 0
    %v1886 = vsel %vm907, %v1877, 0
    %1888 = vmatprep.subr.mxu0 0.0
    %1889 = vmatpush1.msra.mxu0 0.0
    %1890 = vmatprep.subr.mxu0 0.0
    %1891 = vmatpush1.msra.mxu0 0.0
    %1892 = vmatprep.subr.mxu0 0.0
    %1893 = vmatpush1.msra.mxu0 0.0
    %1894 = vmatprep.subr.mxu0 0.0
    %1895 = vmatpush1.msra.mxu0 0.0
    %1896 = vmatprep.subr.mxu0 0.0
    %1897 = vmatpush1.msra.mxu0 0.0
    %1898 = vmatprep.subr.mxu0 0.0
    %1899 = vmatpush1.msra.mxu0 0.0
    %1900 = vmatprep.subr.mxu0 0.0
    %1901 = vmatpush1.msra.mxu0 0.0
    %1902 = vmatprep.subr.mxu0 0.0
    %1903 = vmatpush1.msra.mxu0 0.0
    %1904 = vmatprep.subr.mxu0 0.0
    %1905 = vmatpush1.msra.mxu0 %v1727
    %1906 = vmatprep.subr.mxu0 0.0
    %1907 = vmatpush1.msra.mxu0 %v1726
    %1908 = vmatprep.subr.mxu0 0.0
    %1909 = vmatpush1.msra.mxu0 %v1725
    %1910 = vmatprep.subr.mxu0 0.0
    %1911 = vmatpush1.msra.mxu0 %v1724
    %1912 = vmatprep.subr.mxu0 0.0
    %1913 = vmatpush1.msra.mxu0 %v1723
    %1914 = vmatprep.subr.mxu0 0.0
    %1915 = vmatpush1.msra.mxu0 %v1722
    %1916 = vmatprep.subr.mxu0 0.0
    %1917 = vmatpush1.msra.mxu0 %v1721
    %1918 = vmatprep.subr.mxu0 0.0
    %1919 = vmatpush1.msra.mxu0 %v1720
    %1920 = vmatprep.subr.mxu0 0.0
    %1921 = vmatpush2.msra.mxu0 0.0
    %1922 = vmatprep.subr.mxu0 0.0
    %1923 = vmatpush2.msra.mxu0 0.0
    %1924 = vmatprep.subr.mxu0 0.0
    %1925 = vmatpush2.msra.mxu0 0.0
    %1926 = vmatprep.subr.mxu0 0.0
    %1927 = vmatpush2.msra.mxu0 0.0
    %1928 = vmatprep.subr.mxu0 0.0
    %1929 = vmatpush2.msra.mxu0 0.0
    %1930 = vmatprep.subr.mxu0 0.0
    %1931 = vmatpush2.msra.mxu0 0.0
    %1932 = vmatprep.subr.mxu0 0.0
    %1933 = vmatpush2.msra.mxu0 0.0
    %1934 = vmatprep.subr.mxu0 0.0
    %1935 = vmatpush2.msra.mxu0 0.0
    %1936 = vmatprep.subr.mxu0 0.0
    %1937 = vmatpush2.msra.mxu0 0.0
    %1938 = vmatprep.subr.mxu0 0.0
    %1939 = vmatpush2.msra.mxu0 0.0
    %1940 = vmatprep.subr.mxu0 0.0
    %1941 = vmatpush2.msra.mxu0 0.0
    %1942 = vmatprep.subr.mxu0 0.0
    %1943 = vmatpush2.msra.mxu0 0.0
    %1944 = vmatprep.subr.mxu0 0.0
    %1945 = vmatpush2.msra.mxu0 0.0
    %1946 = vmatprep.subr.mxu0 0.0
    %1947 = vmatpush2.msra.mxu0 0.0
    %1948 = vmatprep.subr.mxu0 0.0
    %1949 = vmatpush2.msra.mxu0 0.0
    %1950 = vmatprep.subr.mxu0 0.0
    %1951 = vmatpush2.msra.mxu0 0.0
    %1952 = vmatprep.mubr.f32.mxu0 0.0
    %1953 = vmatmul.mubr.f32.gmra.mxu0 %v1883
    %v1954 = vpop.f32.mrf.mxu0
    %v1955 = vadd.f32 %v1881, %v1954
    %v1956 = vpop.f32.mrf.mxu0
    %1957 = vmatprep.mubr.f32.mxu0 0.0
    %1958 = vmatmul.mubr.f32.gmra.mxu0 %v1886
    %v1959 = vpop.f32.mrf.mxu0
    %v1960 = vadd.f32 %v1881, %v1959
    %v1961 = vpop.f32.mrf.mxu0
    %1962 = vdwg.mxu0
    %v1963 = vmul.f32 %v1955, 0.5
    %v1964 = vmul.f32 %v1960, 0.5
    %v1965 = vmul.f32 %v1955, 0.70710677
    %v1966 = vmul.f32 %v1960, 0.70710677
    %v1967 = vand.u32 2147483647, %v1965
    %v1968 = vand.u32 2147483647, %v1966
    %v1969 = vmul.f32 %v1967, 0.3275911
    %v1970 = vmul.f32 %v1968, 0.3275911
    %v1971 = vadd.f32 %v1969, 1.0
    %v1972 = vadd.f32 %v1970, 1.0
    %v1973 = vrcp.pop %v1971
    %v1974 = vmul.f32 1.0, %v1973
    %v1975 = vrcp.pop %v1972
    %v1976 = vmul.f32 1.0, %v1975
    %v1977 = vmul.f32 %v1974, 1.0614054
    %v1978 = vmul.f32 %v1976, 1.0614054
    %v1979 = vadd.f32 %v1977, -1.4531521
    %v1980 = vadd.f32 %v1978, -1.4531521
    %v1981 = vmul.f32 %v1979, %v1974
    %v1982 = vmul.f32 %v1980, %v1976
    %v1983 = vadd.f32 %v1981, 1.4214138
    %v1984 = vadd.f32 %v1982, 1.4214138
    %v1985 = vmul.f32 %v1983, %v1974
    %v1986 = vmul.f32 %v1984, %v1976
    %v1987 = vadd.f32 %v1985, -0.28449672
    %v1988 = vadd.f32 %v1986, -0.28449672
    %v1989 = vmul.f32 %v1987, %v1974
    %v1990 = vmul.f32 %v1988, %v1976
    %v1991 = vadd.f32 %v1989, 0.2548296
    %v1992 = vadd.f32 %v1990, 0.2548296
    %v1993 = vmul.f32 %v1991, %v1974
    %v1994 = vmul.f32 %v1992, %v1976
    %v1995 = vsub.f32 0.0, %v1967
    %v1996 = vsub.f32 0.0, %v1968
    %v1997 = vmul.f32 %v1995, %v1967
    %v1998 = vmul.f32 %v1996, %v1968
    %v1999 = vmul.f32 %v1997, 1.442695
    %v2000 = vpow.pop %v1999
    %v2001 = vmul.f32 %v1998, 1.442695
    %v2002 = vpow.pop %v2001
    %v2003 = vmul.f32 %v1993, %v2000
    %v2004 = vmul.f32 %v1994, %v2002
    %v2005 = vsub.f32 1.0, %v2003
    %v2006 = vsub.f32 1.0, %v2004
    %vm2007 = vcmp.ge.f32.partialorder %v1965, 0.0
    %vm2008 = vcmp.ge.f32.partialorder %v1966, 0.0
    %v2009 = vsub.f32 0.0, %v2005
    %v2010 = vsub.f32 0.0, %v2006
    %v2011 = vsel %vm2007, %v2005, %v2009
    %v2012 = vsel %vm2008, %v2006, %v2010
    %v2013 = vadd.f32 %v2011, 1.0
    %v2014 = vadd.f32 %v2012, 1.0
    %v2015 = vmul.f32 %v1963, %v2013
    %v2016 = vmul.f32 %v1964, %v2014
    %v2018 = vsel %vm907, %v2015, 0
    %v2021 = vsel %vm907, %v2016, 0
    %2023 = vmatprep.subr.mxu0 0.0
    %2024 = vmatpush1.msra.mxu0 0.0
    %2025 = vmatprep.subr.mxu0 0.0
    %2026 = vmatpush1.msra.mxu0 0.0
    %2027 = vmatprep.subr.mxu0 0.0
    %2028 = vmatpush1.msra.mxu0 0.0
    %2029 = vmatprep.subr.mxu0 0.0
    %2030 = vmatpush1.msra.mxu0 0.0
    %2031 = vmatprep.subr.mxu0 0.0
    %2032 = vmatpush1.msra.mxu0 0.0
    %2033 = vmatprep.subr.mxu0 0.0
    %2034 = vmatpush1.msra.mxu0 0.0
    %2035 = vmatprep.subr.mxu0 0.0
    %2036 = vmatpush1.msra.mxu0 0.0
    %2037 = vmatprep.subr.mxu0 0.0
    %2038 = vmatpush1.msra.mxu0 0.0
    %2039 = vmatprep.subr.mxu0 0.0
    %2040 = vmatpush1.msra.mxu0 %v1735
    %2041 = vmatprep.subr.mxu0 0.0
    %2042 = vmatpush1.msra.mxu0 %v1734
    %2043 = vmatprep.subr.mxu0 0.0
    %2044 = vmatpush1.msra.mxu0 %v1733
    %2045 = vmatprep.subr.mxu0 0.0
    %2046 = vmatpush1.msra.mxu0 %v1732
    %2047 = vmatprep.subr.mxu0 0.0
    %2048 = vmatpush1.msra.mxu0 %v1731
    %2049 = vmatprep.subr.mxu0 0.0
    %2050 = vmatpush1.msra.mxu0 %v1730
    %2051 = vmatprep.subr.mxu0 0.0
    %2052 = vmatpush1.msra.mxu0 %v1729
    %2053 = vmatprep.subr.mxu0 0.0
    %2054 = vmatpush1.msra.mxu0 %v1728
    %2055 = vmatprep.subr.mxu0 0.0
    %2056 = vmatpush2.msra.mxu0 0.0
    %2057 = vmatprep.subr.mxu0 0.0
    %2058 = vmatpush2.msra.mxu0 0.0
    %2059 = vmatprep.subr.mxu0 0.0
    %2060 = vmatpush2.msra.mxu0 0.0
    %2061 = vmatprep.subr.mxu0 0.0
    %2062 = vmatpush2.msra.mxu0 0.0
    %2063 = vmatprep.subr.mxu0 0.0
    %2064 = vmatpush2.msra.mxu0 0.0
    %2065 = vmatprep.subr.mxu0 0.0
    %2066 = vmatpush2.msra.mxu0 0.0
    %2067 = vmatprep.subr.mxu0 0.0
    %2068 = vmatpush2.msra.mxu0 0.0
    %2069 = vmatprep.subr.mxu0 0.0
    %2070 = vmatpush2.msra.mxu0 0.0
    %2071 = vmatprep.subr.mxu0 0.0
    %2072 = vmatpush2.msra.mxu0 0.0
    %2073 = vmatprep.subr.mxu0 0.0
    %2074 = vmatpush2.msra.mxu0 0.0
    %2075 = vmatprep.subr.mxu0 0.0
    %2076 = vmatpush2.msra.mxu0 0.0
    %2077 = vmatprep.subr.mxu0 0.0
    %2078 = vmatpush2.msra.mxu0 0.0
    %2079 = vmatprep.subr.mxu0 0.0
    %2080 = vmatpush2.msra.mxu0 0.0
    %2081 = vmatprep.subr.mxu0 0.0
    %2082 = vmatpush2.msra.mxu0 0.0
    %2083 = vmatprep.subr.mxu0 0.0
    %2084 = vmatpush2.msra.mxu0 0.0
    %2085 = vmatprep.subr.mxu0 0.0
    %2086 = vmatpush2.msra.mxu0 0.0
    %2087 = vmatprep.mubr.f32.mxu0 0.0
    %2088 = vmatmul.mubr.f32.gmra.mxu0 %v2018
    %v2089 = vpop.f32.mrf.mxu0
    %v2090 = vadd.f32 0.0, %v2089
    %v2091 = vpop.f32.mrf.mxu0
    %2092 = vmatprep.mubr.f32.mxu0 0.0
    %2093 = vmatmul.mubr.f32.gmra.mxu0 %v2021
    %v2094 = vpop.f32.mrf.mxu0
    %v2095 = vadd.f32 0.0, %v2094
    %v2096 = vpop.f32.mrf.mxu0
    %2097 = vdwg.mxu0
    %v2098 = vadd.f32 %v1687, %v2090
    %v2099 = vadd.f32 %v1688, %v2095
    %v2100 = vlaneseq
    %v2101 = vshrl.u32 %v2100, 7
    %v2102 = vsub.s32 0, %v2101
    %v2103 = vrot.slane %v1738, %v2102
    %v2104 = vadd.f32 %v2098, %v2103
    %v2105 = vadd.f32 %v2099, %v2103
    %v2106 = vld [vmem:[%s4] sm:$0xff]
    %v2107 = vld [vmem:[%s4 + $0x8] sm:$0xff]
    %v2108 = vld [vmem:[%s4 + $0x10] sm:$0xff]
    %v2109 = vld [vmem:[%s4 + $0x18] sm:$0xff]
    %v2110 = vld [vmem:[%s4 + $0x20] sm:$0x1]
    %v2111 = vlaneseq
    %v2112 = vshrl.u32 %v2111, 7
    %v2113 = vsub.s32 0, %v2112
    %v2114 = vrot.slane %v2110, %v2113
    %v2116 = vsel %vm134, %v2104, 0
    %v2119 = vsel %vm134, %v2105, 0
    %2121 = vmatprep.subr.mxu0 0.0
    %2122 = vmatpush1.msra.mxu0 0.0
    %2123 = vmatprep.subr.mxu0 0.0
    %2124 = vmatpush1.msra.mxu0 0.0
    %2125 = vmatprep.subr.mxu0 0.0
    %2126 = vmatpush1.msra.mxu0 0.0
    %2127 = vmatprep.subr.mxu0 0.0
    %2128 = vmatpush1.msra.mxu0 0.0
    %2129 = vmatprep.subr.mxu0 0.0
    %2130 = vmatpush1.msra.mxu0 0.0
    %2131 = vmatprep.subr.mxu0 0.0
    %2132 = vmatpush1.msra.mxu0 0.0
    %2133 = vmatprep.subr.mxu0 0.0
    %2134 = vmatpush1.msra.mxu0 0.0
    %2135 = vmatprep.subr.mxu0 0.0
    %2136 = vmatpush1.msra.mxu0 0.0
    %2137 = vmatprep.subr.mxu0 0.0
    %2138 = vmatpush1.msra.mxu0 0.0
    %2139 = vmatprep.subr.mxu0 0.0
    %2140 = vmatpush1.msra.mxu0 0.0
    %2141 = vmatprep.subr.mxu0 0.0
    %2142 = vmatpush1.msra.mxu0 0.0
    %2143 = vmatprep.subr.mxu0 0.0
    %2144 = vmatpush1.msra.mxu0 0.0
    %2145 = vmatprep.subr.mxu0 0.0
    %2146 = vmatpush1.msra.mxu0 %v2109
    %2147 = vmatprep.subr.mxu0 0.0
    %2148 = vmatpush1.msra.mxu0 %v2108
    %2149 = vmatprep.subr.mxu0 0.0
    %2150 = vmatpush1.msra.mxu0 %v2107
    %2151 = vmatprep.subr.mxu0 0.0
    %2152 = vmatpush1.msra.mxu0 %v2106
    %2153 = vmatprep.subr.mxu0 0.0
    %2154 = vmatpush2.msra.mxu0 0.0
    %2155 = vmatprep.subr.mxu0 0.0
    %2156 = vmatpush2.msra.mxu0 0.0
    %2157 = vmatprep.subr.mxu0 0.0
    %2158 = vmatpush2.msra.mxu0 0.0
    %2159 = vmatprep.subr.mxu0 0.0
    %2160 = vmatpush2.msra.mxu0 0.0
    %2161 = vmatprep.subr.mxu0 0.0
    %2162 = vmatpush2.msra.mxu0 0.0
    %2163 = vmatprep.subr.mxu0 0.0
    %2164 = vmatpush2.msra.mxu0 0.0
    %2165 = vmatprep.subr.mxu0 0.0
    %2166 = vmatpush2.msra.mxu0 0.0
    %2167 = vmatprep.subr.mxu0 0.0
    %2168 = vmatpush2.msra.mxu0 0.0
    %2169 = vmatprep.subr.mxu0 0.0
    %2170 = vmatpush2.msra.mxu0 0.0
    %2171 = vmatprep.subr.mxu0 0.0
    %2172 = vmatpush2.msra.mxu0 0.0
    %2173 = vmatprep.subr.mxu0 0.0
    %2174 = vmatpush2.msra.mxu0 0.0
    %2175 = vmatprep.subr.mxu0 0.0
    %2176 = vmatpush2.msra.mxu0 0.0
    %2177 = vmatprep.subr.mxu0 0.0
    %2178 = vmatpush2.msra.mxu0 0.0
    %2179 = vmatprep.subr.mxu0 0.0
    %2180 = vmatpush2.msra.mxu0 0.0
    %2181 = vmatprep.subr.mxu0 0.0
    %2182 = vmatpush2.msra.mxu0 0.0
    %2183 = vmatprep.subr.mxu0 0.0
    %2184 = vmatpush2.msra.mxu0 0.0
    %2185 = vmatprep.mubr.f32.mxu0 0.0
    %2186 = vmatmul.mubr.f32.gmra.mxu0 %v2116
    %v2187 = vpop.f32.mrf.mxu0
    %v2188 = vadd.f32 %v2114, %v2187
    %v2189 = vpop.f32.mrf.mxu0
    %2190 = vmatprep.mubr.f32.mxu0 0.0
    %2191 = vmatmul.mubr.f32.gmra.mxu0 %v2119
    %v2192 = vpop.f32.mrf.mxu0
    %v2193 = vadd.f32 %v2114, %v2192
    %v2194 = vpop.f32.mrf.mxu0
    %2195 = vdwg.mxu0
    %2196 = vst [vmem:[#allocation2] sm:$0xff] %v2188
    %2197 = vst [vmem:[#allocation2 + $0x8] sm:$0xff] %v2193
    // Predicated region
    $region22: #{transformer_forward.1} parent=1 // pred_check
      _
    $region23: #{transformer_forward.1} parent=1 // pred_check_branch
      %2199 = sbr.rel (0) target = $region25
    $region24: #{transformer_forward.1} parent=1 // pred_region
      %s2201 = ssub.s32 256, 256
      %2202 = vsyncadd [#allocation3], %s2201
      %s2203 = sshll.u32 [#allocation2], 4
      %s2204 = int_to_ptr.vmem [resolvable:$true] %s2203
      %2209 = dma.vmem_to_hbm [thread:$0]  %s2204, 256, %s5, [#allocation3], 128, 128, 8
    $region25: #{transformer_forward.1} parent=1 // pred_fallthru
      _
    // Predicated region
    $region26: #{transformer_forward.1} parent=1 // pred_check
      _
    $region27: #{transformer_forward.1} parent=1 // pred_check_branch
      %2211 = sbr.rel (0) target = $region29
    $region28: #{transformer_forward.1} parent=1 // pred_region
      %2212 = dma.done [#allocation3], 256
    $region29: #{transformer_forward.1} parent=1 // pred_fallthru
      _
    %2213 = vsyncpa [#allocation3], 1

</llo_original>
